<compile_context>
chip_gen: v6e
topology: v6e:2x2x1
jax: 0.10.0
libtpu: 0.0.40
codegen_flags: <defaults>
</compile_context>

<pallas_src>
import functools

import jax
import jax.numpy as jnp
from jax.experimental import pallas as pl
from jax.experimental.pallas import tpu as pltpu

LN_EPS = 1e-5


# ----------------------------------------------------------------------------
# Math helpers (used by both the kernel and the pure-jnp reference)
# ----------------------------------------------------------------------------
def _gelu_tanh(x):
    c = 0.7978845608028654  # sqrt(2/pi)
    return 0.5 * x * (1.0 + jnp.tanh(c * (x + 0.044715 * x * x * x)))


def _layernorm(x, g, b, eps):
    mu = jnp.mean(x, axis=-1, keepdims=True)
    xc = x - mu
    var = jnp.mean(xc * xc, axis=-1, keepdims=True)
    return xc * jax.lax.rsqrt(var + eps) * g + b


# ----------------------------------------------------------------------------
# Fused Pallas kernel: one grid step == one batch element
# ----------------------------------------------------------------------------
def _attention_block_kernel(x_ref, ln1g_ref, ln1b_ref, wqkv_ref, bqkv_ref,
                            wo_ref, bo_ref, ln2g_ref, ln2b_ref,
                            w1_ref, b1_ref, w2_ref, b2_ref, o_ref,
                            *, num_heads, head_dim, eps):
    f32 = jnp.float32
    bf16 = jnp.bfloat16

    x = x_ref[0]                                          # (S, E) f32
    S, E = x.shape

    # ---- LayerNorm 1 ----
    xn = _layernorm(x, ln1g_ref[...], ln1b_ref[...], eps)

    # ---- fused QKV projection (bf16 operands, f32 accumulation) ----
    qkv = jnp.dot(xn.astype(bf16), wqkv_ref[...],
                  preferred_element_type=f32) + bqkv_ref[...]       # (S, 3E)

    # ---- per-head scaled dot-product attention + fused output projection ----
    wo_f32 = wo_ref[...].astype(f32)                      # (E, E)
    scale = 1.0 / (head_dim ** 0.5)
    attn_proj = jnp.zeros((S, E), f32)
    for h in range(num_heads):
        lo = h * head_dim
        q = (qkv[:, lo:lo + head_dim] * scale).astype(bf16)          # (S, hd)
        k = qkv[:, E + lo:E + lo + head_dim].astype(bf16)            # (S, hd)
        v = qkv[:, 2 * E + lo:2 * E + lo + head_dim].astype(bf16)    # (S, hd)

        # scores = q @ k^T (contract both last dims; no materialized transpose)
        s = jax.lax.dot_general(q, k, (((1,), (1,)), ((), ())),
                                preferred_element_type=f32)          # (S, S)
        s = s - jnp.max(s, axis=-1, keepdims=True)
        p = jnp.exp(s)
        p = p * pl.reciprocal(jnp.sum(p, axis=-1, keepdims=True), approx=True)

        head = jnp.dot(p.astype(bf16), v, preferred_element_type=f32)  # (S, hd)
        # Accumulate this head's contribution to the output projection.
        attn_proj = attn_proj + jnp.dot(
            head.astype(bf16),
            wo_f32[lo:lo + head_dim, :].astype(bf16),
            preferred_element_type=f32)                              # (S, E)

    x = x + attn_proj + bo_ref[...]                       # residual 1 (f32)

    # ---- LayerNorm 2 + feed-forward (GELU) ----
    x2 = _layernorm(x, ln2g_ref[...], ln2b_ref[...], eps)
    h1 = jnp.dot(x2.astype(bf16), w1_ref[...],
                 preferred_element_type=f32) + b1_ref[...]           # (S, H)
    h1 = _gelu_tanh(h1)
    y = jnp.dot(h1.astype(bf16), w2_ref[...],
                preferred_element_type=f32) + b2_ref[...]            # (S, E)

    o_ref[0] = (x + y).astype(o_ref.dtype)                # residual 2


# ----------------------------------------------------------------------------
# Wrapper
# ----------------------------------------------------------------------------
def _reference_forward(params, xb, num_heads):
    """Pure-jnp f32 reference of the same math (PyTorch AttentionBlock)."""
    B, S, E = xb.shape
    hd = E // num_heads

    def ln(x, g, b):
        return _layernorm(x, g, b, LN_EPS)

    x = xb
    xn = ln(x, params["ln1_g"], params["ln1_b"])
    qkv = xn @ params["wqkv"] + params["bqkv"]
    q, k, v = jnp.split(qkv, 3, axis=-1)

    def heads(t):
        return t.reshape(B, S, num_heads, hd).transpose(0, 2, 1, 3)

    q, k, v = heads(q), heads(k), heads(v)
    s = jnp.einsum("bhqd,bhkd->bhqk", q, k) / jnp.sqrt(float(hd))
    p = jax.nn.softmax(s, axis=-1)
    a = jnp.einsum("bhqk,bhkd->bhqd", p, v).transpose(0, 2, 1, 3).reshape(B, S, E)
    x = x + a @ params["wo"] + params["bo"]

    x2 = ln(x, params["ln2_g"], params["ln2_b"])
    h = _gelu_tanh(x2 @ params["w1"] + params["b1"])
    return x + h @ params["w2"] + params["b2"]


def attention_block_forward(params, x, num_heads, use_pallas=True):
    """x: (seq, batch, embed) — PyTorch nn.MultiheadAttention default layout."""
    S, B, E = x.shape
    H = params["w1"].shape[1]
    head_dim = E // num_heads
    xb = jnp.transpose(x, (1, 0, 2)).astype(jnp.float32)  # (B, S, E)

    if not use_pallas:
        out = _reference_forward(params, xb, num_heads)
        return jnp.transpose(out, (1, 0, 2))

    bf16 = jnp.bfloat16
    row = lambda a: a.reshape(1, -1).astype(jnp.float32)
    kernel = functools.partial(_attention_block_kernel, num_heads=num_heads,
                               head_dim=head_dim, eps=LN_EPS)

    out = pl.pallas_call(
        kernel,
        out_shape=jax.ShapeDtypeStruct((B, S, E), jnp.float32),
        grid=(B,),
        in_specs=[
            pl.BlockSpec((1, S, E), lambda b: (b, 0, 0)),   # x (per batch)
            pl.BlockSpec((1, E), lambda b: (0, 0)),         # ln1 gamma
            pl.BlockSpec((1, E), lambda b: (0, 0)),         # ln1 beta
            pl.BlockSpec((E, 3 * E), lambda b: (0, 0)),     # Wqkv (bf16)
            pl.BlockSpec((1, 3 * E), lambda b: (0, 0)),     # bqkv
            pl.BlockSpec((E, E), lambda b: (0, 0)),         # Wo (bf16)
            pl.BlockSpec((1, E), lambda b: (0, 0)),         # bo
            pl.BlockSpec((1, E), lambda b: (0, 0)),         # ln2 gamma
            pl.BlockSpec((1, E), lambda b: (0, 0)),         # ln2 beta
            pl.BlockSpec((E, H), lambda b: (0, 0)),         # W1 (bf16)
            pl.BlockSpec((1, H), lambda b: (0, 0)),         # b1
            pl.BlockSpec((H, E), lambda b: (0, 0)),         # W2 (bf16)
            pl.BlockSpec((1, E), lambda b: (0, 0)),         # b2
        ],
        out_specs=pl.BlockSpec((1, S, E), lambda b: (b, 0, 0)),
        compiler_params=pltpu.CompilerParams(
            dimension_semantics=("parallel",)),
    )(
        xb,
        row(params["ln1_g"]), row(params["ln1_b"]),
        params["wqkv"].astype(bf16), row(params["bqkv"]),
        params["wo"].astype(bf16), row(params["bo"]),
        row(params["ln2_g"]), row(params["ln2_b"]),
        params["w1"].astype(bf16), row(params["b1"]),
        params["w2"].astype(bf16), row(params["b2"]),
    )
    return jnp.transpose(out, (1, 0, 2))


# ----------------------------------------------------------------------------
# Deterministic parameter init (mirrors the PyTorch module structure)
# ----------------------------------------------------------------------------
def init_params(key, embed_dim, hidden_dim):
    E, H = embed_dim, hidden_dim
    ks = jax.random.split(key, 8)

    def xavier(k, shape):
        fan_in, fan_out = shape
        lim = (6.0 / (fan_in + fan_out)) ** 0.5
        return jax.random.uniform(k, shape, jnp.float32, -lim, lim)

    return {
        "ln1_g": jnp.ones((E,), jnp.float32),
        "ln1_b": jnp.zeros((E,), jnp.float32),
        "wqkv": xavier(ks[0], (E, 3 * E)),   # in_proj_weight.T
        "bqkv": jnp.zeros((3 * E,), jnp.float32),
        "wo": xavier(ks[1], (E, E)),         # out_proj.weight.T
        "bo": jnp.zeros((E,), jnp.float32),
        "ln2_g": jnp.ones((E,), jnp.float32),
        "ln2_b": jnp.zeros((E,), jnp.float32),
        "w1": xavier(ks[2], (E, H)),
        "b1": 0.02 * jax.random.normal(ks[3], (H,), jnp.float32),
        "w2": xavier(ks[4], (H, E)),
        "b2": 0.02 * jax.random.normal(ks[5], (E,), jnp.float32),
    }


# ----------------------------------------------------------------------------
if __name__ == "__main__":
    SEQ, BATCH, EMBED, HIDDEN, NUM_HEADS = 8, 2, 32, 64, 4

    key = jax.random.PRNGKey(0)
    kx, kp = jax.random.split(key)
    x = jax.random.normal(kx, (SEQ, BATCH, EMBED), jnp.float32)  # (S, B, E)
    params = init_params(kp, EMBED, HIDDEN)

    out = attention_block_forward(params, x, NUM_HEADS, use_pallas=True)
    out = jax.block_until_ready(out)
    assert out.shape == (SEQ, BATCH, EMBED), out.shape

    # Sanity-check the Pallas path against a pure-jnp f32 reference of the
    # same math (bf16 matmul operands introduce ~<1% relative deviation).
    ref = jax.block_until_ready(
        attention_block_forward(params, x, NUM_HEADS, use_pallas=False))
    rel_err = jnp.max(jnp.abs(out - ref)) / (jnp.max(jnp.abs(ref)) + 1e-6)
    assert float(rel_err) < 5e-2, float(rel_err)

    print("KERNEL_OK")
</pallas_src>

<mosaic_0001>
module attributes {stable_mosaic.version = 11 : i64} {
  func.func @_attention_block_kernel(%arg0: i32, %arg1: memref<1x8x32xf32, #tpu.memory_space<vmem>>, %arg2: memref<1x32xf32, #tpu.memory_space<vmem>>, %arg3: memref<1x32xf32, #tpu.memory_space<vmem>>, %arg4: memref<32x96xbf16, #tpu.memory_space<vmem>>, %arg5: memref<1x96xf32, #tpu.memory_space<vmem>>, %arg6: memref<32x32xbf16, #tpu.memory_space<vmem>>, %arg7: memref<1x32xf32, #tpu.memory_space<vmem>>, %arg8: memref<1x32xf32, #tpu.memory_space<vmem>>, %arg9: memref<1x32xf32, #tpu.memory_space<vmem>>, %arg10: memref<32x64xbf16, #tpu.memory_space<vmem>>, %arg11: memref<1x64xf32, #tpu.memory_space<vmem>>, %arg12: memref<64x32xbf16, #tpu.memory_space<vmem>>, %arg13: memref<1x32xf32, #tpu.memory_space<vmem>>, %arg14: memref<1x8x32xf32, #tpu.memory_space<vmem>>) attributes {dimension_semantics = [#tpu.dimension_semantics<parallel>], iteration_bounds = array<i64: 2>, scalar_prefetch = 0 : i64, scratch_operands = 0 : i64, tpu.core_type = #tpu.core_type<tc>, window_params = [{transform_indices = @transform_0, window_bounds = array<i64: 1, 8, 32>}, {pipeline_mode = #tpu.pipeline_mode<synchronous>, transform_indices = @transform_1, window_bounds = array<i64: 1, 32>}, {pipeline_mode = #tpu.pipeline_mode<synchronous>, transform_indices = @transform_2, window_bounds = array<i64: 1, 32>}, {pipeline_mode = #tpu.pipeline_mode<synchronous>, transform_indices = @transform_3, window_bounds = array<i64: 32, 96>}, {pipeline_mode = #tpu.pipeline_mode<synchronous>, transform_indices = @transform_4, window_bounds = array<i64: 1, 96>}, {pipeline_mode = #tpu.pipeline_mode<synchronous>, transform_indices = @transform_5, window_bounds = array<i64: 32, 32>}, {pipeline_mode = #tpu.pipeline_mode<synchronous>, transform_indices = @transform_6, window_bounds = array<i64: 1, 32>}, {pipeline_mode = #tpu.pipeline_mode<synchronous>, transform_indices = @transform_7, window_bounds = array<i64: 1, 32>}, {pipeline_mode = #tpu.pipeline_mode<synchronous>, transform_indices = @transform_8, window_bounds = array<i64: 1, 32>}, {pipeline_mode = #tpu.pipeline_mode<synchronous>, transform_indices = @transform_9, window_bounds = array<i64: 32, 64>}, {pipeline_mode = #tpu.pipeline_mode<synchronous>, transform_indices = @transform_10, window_bounds = array<i64: 1, 64>}, {pipeline_mode = #tpu.pipeline_mode<synchronous>, transform_indices = @transform_11, window_bounds = array<i64: 64, 32>}, {pipeline_mode = #tpu.pipeline_mode<synchronous>, transform_indices = @transform_12, window_bounds = array<i64: 1, 32>}, {transform_indices = @transform_13, window_bounds = array<i64: 1, 8, 32>}]} {
    %c0 = arith.constant 0 : index
    %c0_0 = arith.constant 0 : index
    %c0_1 = arith.constant 0 : index
    %0 = vector.load %arg1[%c0, %c0_0, %c0_1] : memref<1x8x32xf32, #tpu.memory_space<vmem>>, vector<1x8x32xf32>
    %1 = vector.shape_cast %0 : vector<1x8x32xf32> to vector<8x32xf32>
    %c0_2 = arith.constant 0 : index
    %c0_3 = arith.constant 0 : index
    %2 = vector.load %arg2[%c0_2, %c0_3] : memref<1x32xf32, #tpu.memory_space<vmem>>, vector<1x32xf32>
    %c0_4 = arith.constant 0 : index
    %c0_5 = arith.constant 0 : index
    %3 = vector.load %arg3[%c0_4, %c0_5] : memref<1x32xf32, #tpu.memory_space<vmem>>, vector<1x32xf32>
    %cst = arith.constant dense<0.000000e+00> : vector<8xf32>
    %4 = vector.multi_reduction <add>, %1, %cst [1] : vector<8x32xf32> to vector<8xf32>
    %5 = vector.shape_cast %4 : vector<8xf32> to vector<8x1xf32>
    %cst_6 = arith.constant 3.200000e+01 : f32
    %6 = vector.broadcast %cst_6 : f32 to vector<8x1xf32>
    %7 = arith.divf %5, %6 : vector<8x1xf32>
    %8 = vector.broadcast %7 : vector<8x1xf32> to vector<8x32xf32>
    %9 = arith.subf %1, %8 : vector<8x32xf32>
    %10 = arith.mulf %9, %9 : vector<8x32xf32>
    %cst_7 = arith.constant dense<0.000000e+00> : vector<8xf32>
    %11 = vector.multi_reduction <add>, %10, %cst_7 [1] : vector<8x32xf32> to vector<8xf32>
    %12 = vector.shape_cast %11 : vector<8xf32> to vector<8x1xf32>
    %cst_8 = arith.constant 3.200000e+01 : f32
    %13 = vector.broadcast %cst_8 : f32 to vector<8x1xf32>
    %14 = arith.divf %12, %13 : vector<8x1xf32>
    %cst_9 = arith.constant 9.99999974E-6 : f32
    %15 = vector.broadcast %cst_9 : f32 to vector<8x1xf32>
    %16 = arith.addf %14, %15 : vector<8x1xf32>
    %17 = math.rsqrt %16 : vector<8x1xf32>
    %18 = vector.broadcast %17 : vector<8x1xf32> to vector<8x32xf32>
    %19 = arith.mulf %9, %18 : vector<8x32xf32>
    %20 = vector.broadcast %2 : vector<1x32xf32> to vector<8x32xf32>
    %21 = arith.mulf %19, %20 : vector<8x32xf32>
    %22 = vector.broadcast %3 : vector<1x32xf32> to vector<8x32xf32>
    %23 = arith.addf %21, %22 : vector<8x32xf32>
    %24 = arith.truncf %23 : vector<8x32xf32> to vector<8x32xbf16>
    %c0_10 = arith.constant 0 : index
    %c0_11 = arith.constant 0 : index
    %25 = vector.load %arg4[%c0_10, %c0_11] : memref<32x96xbf16, #tpu.memory_space<vmem>>, vector<32x96xbf16>
    %cst_12 = arith.constant dense<0.000000e+00> : vector<8x96xf32>
    %26 = tpu.matmul %24, %25, %cst_12 {dimension_numbers = #tpu.dot_dimension_numbers<[1], [0], [0], [1], [0, 0, 1, 1], [], []>} : vector<8x32xbf16>, vector<32x96xbf16>, vector<8x96xf32> -> vector<8x96xf32>
    %c0_13 = arith.constant 0 : index
    %c0_14 = arith.constant 0 : index
    %27 = vector.load %arg5[%c0_13, %c0_14] : memref<1x96xf32, #tpu.memory_space<vmem>>, vector<1x96xf32>
    %28 = vector.broadcast %27 : vector<1x96xf32> to vector<8x96xf32>
    %29 = arith.addf %26, %28 : vector<8x96xf32>
    %c0_15 = arith.constant 0 : index
    %c0_16 = arith.constant 0 : index
    %30 = vector.load %arg6[%c0_15, %c0_16] : memref<32x32xbf16, #tpu.memory_space<vmem>>, vector<32x32xbf16>
    %31 = arith.extf %30 : vector<32x32xbf16> to vector<32x32xf32>
    %cst_17 = arith.constant 0.000000e+00 : f32
    %32 = vector.broadcast %cst_17 : f32 to vector<8x32xf32>
    %33 = vector.extract_strided_slice %29 {offsets = [0, 0], sizes = [8, 8], strides = [1, 1]} : vector<8x96xf32> to vector<8x8xf32>
    %cst_18 = arith.constant 0.353553385 : f32
    %34 = vector.broadcast %cst_18 : f32 to vector<8x8xf32>
    %35 = arith.mulf %33, %34 : vector<8x8xf32>
    %36 = arith.truncf %35 : vector<8x8xf32> to vector<8x8xbf16>
    %37 = vector.extract_strided_slice %29 {offsets = [0, 32], sizes = [8, 8], strides = [1, 1]} : vector<8x96xf32> to vector<8x8xf32>
    %38 = arith.truncf %37 : vector<8x8xf32> to vector<8x8xbf16>
    %39 = vector.extract_strided_slice %29 {offsets = [0, 64], sizes = [8, 8], strides = [1, 1]} : vector<8x96xf32> to vector<8x8xf32>
    %40 = arith.truncf %39 : vector<8x8xf32> to vector<8x8xbf16>
    %cst_19 = arith.constant dense<0.000000e+00> : vector<8x8xf32>
    %41 = tpu.matmul %36, %38, %cst_19 {dimension_numbers = #tpu.dot_dimension_numbers<[1], [1], [0], [0], [0, 0, 1, 0], [], []>} : vector<8x8xbf16>, vector<8x8xbf16>, vector<8x8xf32> -> vector<8x8xf32>
    %cst_20 = arith.constant dense<0xFF800000> : vector<8xf32>
    %42 = vector.multi_reduction <maximumf>, %41, %cst_20 [1] : vector<8x8xf32> to vector<8xf32>
    %43 = vector.shape_cast %42 : vector<8xf32> to vector<8x1xf32>
    %44 = vector.broadcast %43 : vector<8x1xf32> to vector<8x8xf32>
    %45 = arith.subf %41, %44 : vector<8x8xf32>
    %46 = math.exp %45 : vector<8x8xf32>
    %cst_21 = arith.constant dense<0.000000e+00> : vector<8xf32>
    %47 = vector.multi_reduction <add>, %46, %cst_21 [1] : vector<8x8xf32> to vector<8xf32>
    %48 = vector.shape_cast %47 : vector<8xf32> to vector<8x1xf32>
    %49 = tpu.reciprocal %48 {approx = true} : vector<8x1xf32> -> vector<8x1xf32>
    %50 = vector.broadcast %49 : vector<8x1xf32> to vector<8x8xf32>
    %51 = arith.mulf %46, %50 : vector<8x8xf32>
    %52 = arith.truncf %51 : vector<8x8xf32> to vector<8x8xbf16>
    %cst_22 = arith.constant dense<0.000000e+00> : vector<8x8xf32>
    %53 = tpu.matmul %52, %40, %cst_22 {dimension_numbers = #tpu.dot_dimension_numbers<[1], [0], [0], [1], [0, 0, 1, 1], [], []>} : vector<8x8xbf16>, vector<8x8xbf16>, vector<8x8xf32> -> vector<8x8xf32>
    %54 = arith.truncf %53 : vector<8x8xf32> to vector<8x8xbf16>
    %55 = vector.extract_strided_slice %31 {offsets = [0, 0], sizes = [8, 32], strides = [1, 1]} : vector<32x32xf32> to vector<8x32xf32>
    %56 = arith.truncf %55 : vector<8x32xf32> to vector<8x32xbf16>
    %cst_23 = arith.constant dense<0.000000e+00> : vector<8x32xf32>
    %57 = tpu.matmul %54, %56, %cst_23 {dimension_numbers = #tpu.dot_dimension_numbers<[1], [0], [0], [1], [0, 0, 1, 1], [], []>} : vector<8x8xbf16>, vector<8x32xbf16>, vector<8x32xf32> -> vector<8x32xf32>
    %58 = arith.addf %32, %57 : vector<8x32xf32>
    %59 = vector.extract_strided_slice %29 {offsets = [0, 8], sizes = [8, 8], strides = [1, 1]} : vector<8x96xf32> to vector<8x8xf32>
    %cst_24 = arith.constant 0.353553385 : f32
    %60 = vector.broadcast %cst_24 : f32 to vector<8x8xf32>
    %61 = arith.mulf %59, %60 : vector<8x8xf32>
    %62 = arith.truncf %61 : vector<8x8xf32> to vector<8x8xbf16>
    %63 = vector.extract_strided_slice %29 {offsets = [0, 40], sizes = [8, 8], strides = [1, 1]} : vector<8x96xf32> to vector<8x8xf32>
    %64 = arith.truncf %63 : vector<8x8xf32> to vector<8x8xbf16>
    %65 = vector.extract_strided_slice %29 {offsets = [0, 72], sizes = [8, 8], strides = [1, 1]} : vector<8x96xf32> to vector<8x8xf32>
    %66 = arith.truncf %65 : vector<8x8xf32> to vector<8x8xbf16>
    %cst_25 = arith.constant dense<0.000000e+00> : vector<8x8xf32>
    %67 = tpu.matmul %62, %64, %cst_25 {dimension_numbers = #tpu.dot_dimension_numbers<[1], [1], [0], [0], [0, 0, 1, 0], [], []>} : vector<8x8xbf16>, vector<8x8xbf16>, vector<8x8xf32> -> vector<8x8xf32>
    %cst_26 = arith.constant dense<0xFF800000> : vector<8xf32>
    %68 = vector.multi_reduction <maximumf>, %67, %cst_26 [1] : vector<8x8xf32> to vector<8xf32>
    %69 = vector.shape_cast %68 : vector<8xf32> to vector<8x1xf32>
    %70 = vector.broadcast %69 : vector<8x1xf32> to vector<8x8xf32>
    %71 = arith.subf %67, %70 : vector<8x8xf32>
    %72 = math.exp %71 : vector<8x8xf32>
    %cst_27 = arith.constant dense<0.000000e+00> : vector<8xf32>
    %73 = vector.multi_reduction <add>, %72, %cst_27 [1] : vector<8x8xf32> to vector<8xf32>
    %74 = vector.shape_cast %73 : vector<8xf32> to vector<8x1xf32>
    %75 = tpu.reciprocal %74 {approx = true} : vector<8x1xf32> -> vector<8x1xf32>
    %76 = vector.broadcast %75 : vector<8x1xf32> to vector<8x8xf32>
    %77 = arith.mulf %72, %76 : vector<8x8xf32>
    %78 = arith.truncf %77 : vector<8x8xf32> to vector<8x8xbf16>
    %cst_28 = arith.constant dense<0.000000e+00> : vector<8x8xf32>
    %79 = tpu.matmul %78, %66, %cst_28 {dimension_numbers = #tpu.dot_dimension_numbers<[1], [0], [0], [1], [0, 0, 1, 1], [], []>} : vector<8x8xbf16>, vector<8x8xbf16>, vector<8x8xf32> -> vector<8x8xf32>
    %80 = arith.truncf %79 : vector<8x8xf32> to vector<8x8xbf16>
    %81 = vector.extract_strided_slice %31 {offsets = [8, 0], sizes = [8, 32], strides = [1, 1]} : vector<32x32xf32> to vector<8x32xf32>
    %82 = arith.truncf %81 : vector<8x32xf32> to vector<8x32xbf16>
    %cst_29 = arith.constant dense<0.000000e+00> : vector<8x32xf32>
    %83 = tpu.matmul %80, %82, %cst_29 {dimension_numbers = #tpu.dot_dimension_numbers<[1], [0], [0], [1], [0, 0, 1, 1], [], []>} : vector<8x8xbf16>, vector<8x32xbf16>, vector<8x32xf32> -> vector<8x32xf32>
    %84 = arith.addf %58, %83 : vector<8x32xf32>
    %85 = vector.extract_strided_slice %29 {offsets = [0, 16], sizes = [8, 8], strides = [1, 1]} : vector<8x96xf32> to vector<8x8xf32>
    %cst_30 = arith.constant 0.353553385 : f32
    %86 = vector.broadcast %cst_30 : f32 to vector<8x8xf32>
    %87 = arith.mulf %85, %86 : vector<8x8xf32>
    %88 = arith.truncf %87 : vector<8x8xf32> to vector<8x8xbf16>
    %89 = vector.extract_strided_slice %29 {offsets = [0, 48], sizes = [8, 8], strides = [1, 1]} : vector<8x96xf32> to vector<8x8xf32>
    %90 = arith.truncf %89 : vector<8x8xf32> to vector<8x8xbf16>
    %91 = vector.extract_strided_slice %29 {offsets = [0, 80], sizes = [8, 8], strides = [1, 1]} : vector<8x96xf32> to vector<8x8xf32>
    %92 = arith.truncf %91 : vector<8x8xf32> to vector<8x8xbf16>
    %cst_31 = arith.constant dense<0.000000e+00> : vector<8x8xf32>
    %93 = tpu.matmul %88, %90, %cst_31 {dimension_numbers = #tpu.dot_dimension_numbers<[1], [1], [0], [0], [0, 0, 1, 0], [], []>} : vector<8x8xbf16>, vector<8x8xbf16>, vector<8x8xf32> -> vector<8x8xf32>
    %cst_32 = arith.constant dense<0xFF800000> : vector<8xf32>
    %94 = vector.multi_reduction <maximumf>, %93, %cst_32 [1] : vector<8x8xf32> to vector<8xf32>
    %95 = vector.shape_cast %94 : vector<8xf32> to vector<8x1xf32>
    %96 = vector.broadcast %95 : vector<8x1xf32> to vector<8x8xf32>
    %97 = arith.subf %93, %96 : vector<8x8xf32>
    %98 = math.exp %97 : vector<8x8xf32>
    %cst_33 = arith.constant dense<0.000000e+00> : vector<8xf32>
    %99 = vector.multi_reduction <add>, %98, %cst_33 [1] : vector<8x8xf32> to vector<8xf32>
    %100 = vector.shape_cast %99 : vector<8xf32> to vector<8x1xf32>
    %101 = tpu.reciprocal %100 {approx = true} : vector<8x1xf32> -> vector<8x1xf32>
    %102 = vector.broadcast %101 : vector<8x1xf32> to vector<8x8xf32>
    %103 = arith.mulf %98, %102 : vector<8x8xf32>
    %104 = arith.truncf %103 : vector<8x8xf32> to vector<8x8xbf16>
    %cst_34 = arith.constant dense<0.000000e+00> : vector<8x8xf32>
    %105 = tpu.matmul %104, %92, %cst_34 {dimension_numbers = #tpu.dot_dimension_numbers<[1], [0], [0], [1], [0, 0, 1, 1], [], []>} : vector<8x8xbf16>, vector<8x8xbf16>, vector<8x8xf32> -> vector<8x8xf32>
    %106 = arith.truncf %105 : vector<8x8xf32> to vector<8x8xbf16>
    %107 = vector.extract_strided_slice %31 {offsets = [16, 0], sizes = [8, 32], strides = [1, 1]} : vector<32x32xf32> to vector<8x32xf32>
    %108 = arith.truncf %107 : vector<8x32xf32> to vector<8x32xbf16>
    %cst_35 = arith.constant dense<0.000000e+00> : vector<8x32xf32>
    %109 = tpu.matmul %106, %108, %cst_35 {dimension_numbers = #tpu.dot_dimension_numbers<[1], [0], [0], [1], [0, 0, 1, 1], [], []>} : vector<8x8xbf16>, vector<8x32xbf16>, vector<8x32xf32> -> vector<8x32xf32>
    %110 = arith.addf %84, %109 : vector<8x32xf32>
    %111 = vector.extract_strided_slice %29 {offsets = [0, 24], sizes = [8, 8], strides = [1, 1]} : vector<8x96xf32> to vector<8x8xf32>
    %cst_36 = arith.constant 0.353553385 : f32
    %112 = vector.broadcast %cst_36 : f32 to vector<8x8xf32>
    %113 = arith.mulf %111, %112 : vector<8x8xf32>
    %114 = arith.truncf %113 : vector<8x8xf32> to vector<8x8xbf16>
    %115 = vector.extract_strided_slice %29 {offsets = [0, 56], sizes = [8, 8], strides = [1, 1]} : vector<8x96xf32> to vector<8x8xf32>
    %116 = arith.truncf %115 : vector<8x8xf32> to vector<8x8xbf16>
    %117 = vector.extract_strided_slice %29 {offsets = [0, 88], sizes = [8, 8], strides = [1, 1]} : vector<8x96xf32> to vector<8x8xf32>
    %118 = arith.truncf %117 : vector<8x8xf32> to vector<8x8xbf16>
    %cst_37 = arith.constant dense<0.000000e+00> : vector<8x8xf32>
    %119 = tpu.matmul %114, %116, %cst_37 {dimension_numbers = #tpu.dot_dimension_numbers<[1], [1], [0], [0], [0, 0, 1, 0], [], []>} : vector<8x8xbf16>, vector<8x8xbf16>, vector<8x8xf32> -> vector<8x8xf32>
    %cst_38 = arith.constant dense<0xFF800000> : vector<8xf32>
    %120 = vector.multi_reduction <maximumf>, %119, %cst_38 [1] : vector<8x8xf32> to vector<8xf32>
    %121 = vector.shape_cast %120 : vector<8xf32> to vector<8x1xf32>
    %122 = vector.broadcast %121 : vector<8x1xf32> to vector<8x8xf32>
    %123 = arith.subf %119, %122 : vector<8x8xf32>
    %124 = math.exp %123 : vector<8x8xf32>
    %cst_39 = arith.constant dense<0.000000e+00> : vector<8xf32>
    %125 = vector.multi_reduction <add>, %124, %cst_39 [1] : vector<8x8xf32> to vector<8xf32>
    %126 = vector.shape_cast %125 : vector<8xf32> to vector<8x1xf32>
    %127 = tpu.reciprocal %126 {approx = true} : vector<8x1xf32> -> vector<8x1xf32>
    %128 = vector.broadcast %127 : vector<8x1xf32> to vector<8x8xf32>
    %129 = arith.mulf %124, %128 : vector<8x8xf32>
    %130 = arith.truncf %129 : vector<8x8xf32> to vector<8x8xbf16>
    %cst_40 = arith.constant dense<0.000000e+00> : vector<8x8xf32>
    %131 = tpu.matmul %130, %118, %cst_40 {dimension_numbers = #tpu.dot_dimension_numbers<[1], [0], [0], [1], [0, 0, 1, 1], [], []>} : vector<8x8xbf16>, vector<8x8xbf16>, vector<8x8xf32> -> vector<8x8xf32>
    %132 = arith.truncf %131 : vector<8x8xf32> to vector<8x8xbf16>
    %133 = vector.extract_strided_slice %31 {offsets = [24, 0], sizes = [8, 32], strides = [1, 1]} : vector<32x32xf32> to vector<8x32xf32>
    %134 = arith.truncf %133 : vector<8x32xf32> to vector<8x32xbf16>
    %cst_41 = arith.constant dense<0.000000e+00> : vector<8x32xf32>
    %135 = tpu.matmul %132, %134, %cst_41 {dimension_numbers = #tpu.dot_dimension_numbers<[1], [0], [0], [1], [0, 0, 1, 1], [], []>} : vector<8x8xbf16>, vector<8x32xbf16>, vector<8x32xf32> -> vector<8x32xf32>
    %136 = arith.addf %110, %135 : vector<8x32xf32>
    %137 = arith.addf %1, %136 : vector<8x32xf32>
    %c0_42 = arith.constant 0 : index
    %c0_43 = arith.constant 0 : index
    %138 = vector.load %arg7[%c0_42, %c0_43] : memref<1x32xf32, #tpu.memory_space<vmem>>, vector<1x32xf32>
    %139 = vector.broadcast %138 : vector<1x32xf32> to vector<8x32xf32>
    %140 = arith.addf %137, %139 : vector<8x32xf32>
    %c0_44 = arith.constant 0 : index
    %c0_45 = arith.constant 0 : index
    %141 = vector.load %arg8[%c0_44, %c0_45] : memref<1x32xf32, #tpu.memory_space<vmem>>, vector<1x32xf32>
    %c0_46 = arith.constant 0 : index
    %c0_47 = arith.constant 0 : index
    %142 = vector.load %arg9[%c0_46, %c0_47] : memref<1x32xf32, #tpu.memory_space<vmem>>, vector<1x32xf32>
    %cst_48 = arith.constant dense<0.000000e+00> : vector<8xf32>
    %143 = vector.multi_reduction <add>, %140, %cst_48 [1] : vector<8x32xf32> to vector<8xf32>
    %144 = vector.shape_cast %143 : vector<8xf32> to vector<8x1xf32>
    %cst_49 = arith.constant 3.200000e+01 : f32
    %145 = vector.broadcast %cst_49 : f32 to vector<8x1xf32>
    %146 = arith.divf %144, %145 : vector<8x1xf32>
    %147 = vector.broadcast %146 : vector<8x1xf32> to vector<8x32xf32>
    %148 = arith.subf %140, %147 : vector<8x32xf32>
    %149 = arith.mulf %148, %148 : vector<8x32xf32>
    %cst_50 = arith.constant dense<0.000000e+00> : vector<8xf32>
    %150 = vector.multi_reduction <add>, %149, %cst_50 [1] : vector<8x32xf32> to vector<8xf32>
    %151 = vector.shape_cast %150 : vector<8xf32> to vector<8x1xf32>
    %cst_51 = arith.constant 3.200000e+01 : f32
    %152 = vector.broadcast %cst_51 : f32 to vector<8x1xf32>
    %153 = arith.divf %151, %152 : vector<8x1xf32>
    %cst_52 = arith.constant 9.99999974E-6 : f32
    %154 = vector.broadcast %cst_52 : f32 to vector<8x1xf32>
    %155 = arith.addf %153, %154 : vector<8x1xf32>
    %156 = math.rsqrt %155 : vector<8x1xf32>
    %157 = vector.broadcast %156 : vector<8x1xf32> to vector<8x32xf32>
    %158 = arith.mulf %148, %157 : vector<8x32xf32>
    %159 = vector.broadcast %141 : vector<1x32xf32> to vector<8x32xf32>
    %160 = arith.mulf %158, %159 : vector<8x32xf32>
    %161 = vector.broadcast %142 : vector<1x32xf32> to vector<8x32xf32>
    %162 = arith.addf %160, %161 : vector<8x32xf32>
    %163 = arith.truncf %162 : vector<8x32xf32> to vector<8x32xbf16>
    %c0_53 = arith.constant 0 : index
    %c0_54 = arith.constant 0 : index
    %164 = vector.load %arg10[%c0_53, %c0_54] : memref<32x64xbf16, #tpu.memory_space<vmem>>, vector<32x64xbf16>
    %cst_55 = arith.constant dense<0.000000e+00> : vector<8x64xf32>
    %165 = tpu.matmul %163, %164, %cst_55 {dimension_numbers = #tpu.dot_dimension_numbers<[1], [0], [0], [1], [0, 0, 1, 1], [], []>} : vector<8x32xbf16>, vector<32x64xbf16>, vector<8x64xf32> -> vector<8x64xf32>
    %c0_56 = arith.constant 0 : index
    %c0_57 = arith.constant 0 : index
    %166 = vector.load %arg11[%c0_56, %c0_57] : memref<1x64xf32, #tpu.memory_space<vmem>>, vector<1x64xf32>
    %167 = vector.broadcast %166 : vector<1x64xf32> to vector<8x64xf32>
    %168 = arith.addf %165, %167 : vector<8x64xf32>
    %cst_58 = arith.constant 5.000000e-01 : f32
    %169 = vector.broadcast %cst_58 : f32 to vector<8x64xf32>
    %170 = arith.mulf %169, %168 : vector<8x64xf32>
    %cst_59 = arith.constant 4.471500e-02 : f32
    %171 = vector.broadcast %cst_59 : f32 to vector<8x64xf32>
    %172 = arith.mulf %171, %168 : vector<8x64xf32>
    %173 = arith.mulf %172, %168 : vector<8x64xf32>
    %174 = arith.mulf %173, %168 : vector<8x64xf32>
    %175 = arith.addf %168, %174 : vector<8x64xf32>
    %cst_60 = arith.constant 0.797884583 : f32
    %176 = vector.broadcast %cst_60 : f32 to vector<8x64xf32>
    %177 = arith.mulf %176, %175 : vector<8x64xf32>
    %178 = math.tanh %177 : vector<8x64xf32>
    %cst_61 = arith.constant 1.000000e+00 : f32
    %179 = vector.broadcast %cst_61 : f32 to vector<8x64xf32>
    %180 = arith.addf %179, %178 : vector<8x64xf32>
    %181 = arith.mulf %170, %180 : vector<8x64xf32>
    %182 = arith.truncf %181 : vector<8x64xf32> to vector<8x64xbf16>
    %c0_62 = arith.constant 0 : index
    %c0_63 = arith.constant 0 : index
    %183 = vector.load %arg12[%c0_62, %c0_63] : memref<64x32xbf16, #tpu.memory_space<vmem>>, vector<64x32xbf16>
    %cst_64 = arith.constant dense<0.000000e+00> : vector<8x32xf32>
    %184 = tpu.matmul %182, %183, %cst_64 {dimension_numbers = #tpu.dot_dimension_numbers<[1], [0], [0], [1], [0, 0, 1, 1], [], []>} : vector<8x64xbf16>, vector<64x32xbf16>, vector<8x32xf32> -> vector<8x32xf32>
    %c0_65 = arith.constant 0 : index
    %c0_66 = arith.constant 0 : index
    %185 = vector.load %arg13[%c0_65, %c0_66] : memref<1x32xf32, #tpu.memory_space<vmem>>, vector<1x32xf32>
    %186 = vector.broadcast %185 : vector<1x32xf32> to vector<8x32xf32>
    %187 = arith.addf %184, %186 : vector<8x32xf32>
    %188 = arith.addf %140, %187 : vector<8x32xf32>
    %c0_67 = arith.constant 0 : index
    %c0_68 = arith.constant 0 : index
    %c0_69 = arith.constant 0 : index
    %189 = vector.load %arg14[%c0_67, %c0_68, %c0_69] : memref<1x8x32xf32, #tpu.memory_space<vmem>>, vector<1x8x32xf32>
    %190 = vector.shape_cast %189 : vector<1x8x32xf32> to vector<8x32xf32>
    %191 = vector.shape_cast %188 : vector<8x32xf32> to vector<1x8x32xf32>
    tpu.vector_store %arg14[%c0_67, %c0_68, %c0_69], %191 {strides = array<i32>} : memref<1x8x32xf32, #tpu.memory_space<vmem>>, vector<1x8x32xf32>,
    return
  }
  func.func @transform_0(%arg0: i32) -> (i32, i32, i32) {
    %c0_i32 = arith.constant 0 : i32
    %c0_i32_0 = arith.constant 0 : i32
    %c0_i32_1 = arith.constant 0 : i32
    return %arg0, %c0_i32, %c0_i32_0 : i32, i32, i32
  }
  func.func @transform_1(%arg0: i32) -> (i32, i32) {
    %c0_i32 = arith.constant 0 : i32
    %c0_i32_0 = arith.constant 0 : i32
    %c0_i32_1 = arith.constant 0 : i32
    return %c0_i32, %c0_i32_0 : i32, i32
  }
  func.func @transform_2(%arg0: i32) -> (i32, i32) {
    %c0_i32 = arith.constant 0 : i32
    %c0_i32_0 = arith.constant 0 : i32
    %c0_i32_1 = arith.constant 0 : i32
    return %c0_i32, %c0_i32_0 : i32, i32
  }
  func.func @transform_3(%arg0: i32) -> (i32, i32) {
    %c0_i32 = arith.constant 0 : i32
    %c0_i32_0 = arith.constant 0 : i32
    %c0_i32_1 = arith.constant 0 : i32
    return %c0_i32, %c0_i32_0 : i32, i32
  }
  func.func @transform_4(%arg0: i32) -> (i32, i32) {
    %c0_i32 = arith.constant 0 : i32
    %c0_i32_0 = arith.constant 0 : i32
    %c0_i32_1 = arith.constant 0 : i32
    return %c0_i32, %c0_i32_0 : i32, i32
  }
  func.func @transform_5(%arg0: i32) -> (i32, i32) {
    %c0_i32 = arith.constant 0 : i32
    %c0_i32_0 = arith.constant 0 : i32
    %c0_i32_1 = arith.constant 0 : i32
    return %c0_i32, %c0_i32_0 : i32, i32
  }
  func.func @transform_6(%arg0: i32) -> (i32, i32) {
    %c0_i32 = arith.constant 0 : i32
    %c0_i32_0 = arith.constant 0 : i32
    %c0_i32_1 = arith.constant 0 : i32
    return %c0_i32, %c0_i32_0 : i32, i32
  }
  func.func @transform_7(%arg0: i32) -> (i32, i32) {
    %c0_i32 = arith.constant 0 : i32
    %c0_i32_0 = arith.constant 0 : i32
    %c0_i32_1 = arith.constant 0 : i32
    return %c0_i32, %c0_i32_0 : i32, i32
  }
  func.func @transform_8(%arg0: i32) -> (i32, i32) {
    %c0_i32 = arith.constant 0 : i32
    %c0_i32_0 = arith.constant 0 : i32
    %c0_i32_1 = arith.constant 0 : i32
    return %c0_i32, %c0_i32_0 : i32, i32
  }
  func.func @transform_9(%arg0: i32) -> (i32, i32) {
    %c0_i32 = arith.constant 0 : i32
    %c0_i32_0 = arith.constant 0 : i32
    %c0_i32_1 = arith.constant 0 : i32
    return %c0_i32, %c0_i32_0 : i32, i32
  }
  func.func @transform_10(%arg0: i32) -> (i32, i32) {
    %c0_i32 = arith.constant 0 : i32
    %c0_i32_0 = arith.constant 0 : i32
    %c0_i32_1 = arith.constant 0 : i32
    return %c0_i32, %c0_i32_0 : i32, i32
  }
  func.func @transform_11(%arg0: i32) -> (i32, i32) {
    %c0_i32 = arith.constant 0 : i32
    %c0_i32_0 = arith.constant 0 : i32
    %c0_i32_1 = arith.constant 0 : i32
    return %c0_i32, %c0_i32_0 : i32, i32
  }
  func.func @transform_12(%arg0: i32) -> (i32, i32) {
    %c0_i32 = arith.constant 0 : i32
    %c0_i32_0 = arith.constant 0 : i32
    %c0_i32_1 = arith.constant 0 : i32
    return %c0_i32, %c0_i32_0 : i32, i32
  }
  func.func @transform_13(%arg0: i32) -> (i32, i32, i32) {
    %c0_i32 = arith.constant 0 : i32
    %c0_i32_0 = arith.constant 0 : i32
    %c0_i32_1 = arith.constant 0 : i32
    return %arg0, %c0_i32, %c0_i32_0 : i32, i32, i32
  }
}

</mosaic_0001>

<llo_original>
// kernel: tpu_custom_call.1
$region0: #{tpu_custom_call.1}
  #allocation0 [shape = 'u32[]', space=smem, size = 0x4, offset = 0x4, fixed_abs, tag = 'smem constant byte address 0x4 - core index']
  #allocation1 [shape = 'u32[144,128]{1,0:T(1,128)}', space=vmem, size = 0x12000, scoped, tag = 'internal scratch']
  %s0 = inlined_call_operand.vmem [shape: f32[2,8,32], index: 0, kind: input, shape index: {}]
  %s1 = inlined_call_operand.vmem [shape: f32[1,32], index: 1, kind: input, shape index: {}]
  %s2 = inlined_call_operand.vmem [shape: f32[1,32], index: 2, kind: input, shape index: {}]
  %s3 = inlined_call_operand.vmem [shape: bf16[32,96], index: 3, kind: input, shape index: {}]
  %s4 = inlined_call_operand.vmem [shape: f32[1,96], index: 4, kind: input, shape index: {}]
  %s5 = inlined_call_operand.vmem [shape: bf16[32,32], index: 5, kind: input, shape index: {}]
  %s6 = inlined_call_operand.vmem [shape: f32[1,32], index: 6, kind: input, shape index: {}]
  %s7 = inlined_call_operand.hbm [shape: f32[1,32], index: 7, kind: input, shape index: {}]
  %s8 = inlined_call_operand.hbm [shape: f32[1,32], index: 8, kind: input, shape index: {}]
  %s9 = inlined_call_operand.hbm [shape: bf16[32,64], index: 9, kind: input, shape index: {}]
  %s10 = inlined_call_operand.hbm [shape: f32[1,64], index: 10, kind: input, shape index: {}]
  %s11 = inlined_call_operand.vmem [shape: bf16[64,32], index: 11, kind: input, shape index: {}]
  %s12 = inlined_call_operand.vmem [shape: f32[1,32], index: 12, kind: input, shape index: {}]
  %s13 = inlined_call_operand.hbm [shape: f32[2,8,32], index: 13, kind: output, shape index: {}]
  %s14 = sld [smem:[#allocation0]]
  $region101: #{tpu_custom_call.1} parent=0
    _
  %s16 = ssub.s32 1, %s14
  %s17 = scalar_select 0, %s16, %s14
  $region1: #{tpu_custom_call.1} parent=0
    #allocation2 [shape = 'u8[512]{0}', space=vmem, size = 0x400, scoped, tag = 'input window, operand 7, single buffered']
    #allocation3 [shape = 's32[2]{0}', space=sflag, size = 0x8, scoped, tag = 'scoped memory for tpu_custom_call.1']
    #allocation4 [shape = 's32[2]{0}', space=sflag, size = 0x8, scoped, tag = 'scoped memory for tpu_custom_call.1']
    #allocation5 [shape = 'u8[512]{0}', space=vmem, size = 0x400, scoped, tag = 'input window, operand 8, single buffered']
    #allocation6 [shape = 's32[1]{0}', space=sflag, size = 0x4, scoped, tag = 'scoped memory for tpu_custom_call.1']
    #allocation7 [shape = 'u8[8192]{0}', space=vmem, size = 0x2000, scoped, tag = 'input window, operand 9, single buffered']
    #allocation8 [shape = 'u8[512]{0}', space=vmem, size = 0x400, scoped, tag = 'input window, operand 10, single buffered']
    #allocation9 [shape = 's32[1]{0}', space=sflag, size = 0x4, scoped, tag = 'scoped memory for tpu_custom_call.1']
    #allocation10 [shape = 'u8[8192]{0}', space=vmem, size = 0x2000, scoped, tag = 'output window, operand 0']
    %18 = vsyncpa [#allocation3], 0
    %19 = vsyncpa [#allocation6], 0
    %20 = vsyncpa [#allocation9], 0
    %21 = vsyncpa [#allocation4], 0
    %s22 = scalar_lea.sflag [#allocation4], 1
    %23 = vsyncpa %s22, 0
    loop: start=0, step=1, limit=4
    $region2: #{tpu_custom_call.1} parent=1 // loop_pre_header
      _
    $region3: #{tpu_custom_call.1} parent=1 // loop_header
      %s25 = sphi 0, %s29
      %p26 = scmp.ge.s32.totalorder %s25, 4
      %s35 = sphi 0, %s37
      %s38 = sphi 0, %s35
      %s39 = sphi 0, %s38
      %s55 = sphi 0, %s39
      %s59 = sphi 0, %s59
      %s61 = sphi 0, %s59
      %s62 = sphi 0, %s61
      %s76 = sphi 0, %s62
      %s80 = sphi 0, %s80
      %s82 = sphi 0, %s80
      %s83 = sphi 0, %s82
      %s97 = sphi 0, %s83
      %s101 = sphi 0, %s101
      %s103 = sphi 0, %s101
      %s104 = sphi 0, %s103
      %s118 = sphi 0, %s104
      %s122 = sphi 0, %s122
      %s124 = sphi 0, %s122
      %s125 = sphi 0, %s124
      %s139 = sphi 0, %s125
      %s143 = sphi 0, %s143
      %s145 = sphi 0, %s143
      %s146 = sphi 0, %s145
      %s160 = sphi 0, %s146
      %s164 = sphi 0, %s164
      %s166 = sphi 0, %s164
      %s167 = sphi 0, %s166
      %s181 = sphi 0, %s167
      %s185 = sphi 0, %s185
      %s187 = sphi 0, %s185
      %s188 = sphi 0, %s187
      %s202 = sphi 0, %s188
      %s206 = sphi 0, %s206
      %s208 = sphi 0, %s206
      %s209 = sphi 0, %s208
      %s223 = sphi 0, %s209
      %s227 = sphi 0, %s227
      %s229 = sphi 0, %s227
      %s230 = sphi 0, %s229
      %s244 = sphi 0, %s230
      %s248 = sphi 0, %s248
      %s250 = sphi 0, %s248
      %s251 = sphi 0, %s250
      %s265 = sphi 0, %s251
      %s269 = sphi 0, %s269
      %s271 = sphi 0, %s269
      %s272 = sphi 0, %s271
      %s286 = sphi 0, %s272
      %s290 = sphi 0, %s290
      %s292 = sphi 0, %s290
      %s293 = sphi 0, %s292
      %s307 = sphi 0, %s293
      %s313 = sphi 0, %s315
      %s316 = sphi 0, %s313
      %s317 = sphi 0, %s316
      %s333 = sphi 0, %s317
    $region4: #{tpu_custom_call.1} parent=1 // loop_header_branch
      %28 = sbr.rel (%p26) target = $region8
    $region5: #{tpu_custom_call.1} parent=1 // loop_body
      %s30 = ssub.s32 %s25, 1
      %s31 = ssub.s32 %s25, 2
      %s32 = sadd.s32 %s25, 1
      %s33 = ssub.s32 %s25, %s32
      %p34 = scmp.eq.s32.totalorder %s33, 0
      %s36 = sadd.s32 %s35, 1
      %s37 = scalar_select %p34, %s35, %s36
      %p40 = pneg %p34
      %p41 = scmp.eq.s32.totalorder %s25, 1
      %p42 = por %p40, %p41
      %p43 = scmp.ne.s32.totalorder %s35, %s38
      %p44 = scmp.eq.s32.totalorder %s25, 0
      %p45 = por %p43, %p44
      %p46 = scmp.ne.s32.totalorder %s35, %s38
      %p47 = scmp.eq.s32.totalorder %s30, 1
      %p48 = por %p46, %p47
      %p49 = scmp.ne.s32.totalorder %s38, %s39
      %p50 = scmp.eq.s32.totalorder %s30, 0
      %p51 = por %p49, %p50
      %p52 = scmp.ne.s32.totalorder %s38, %s39
      %p53 = scmp.eq.s32.totalorder %s31, 1
      %p54 = por %p52, %p53
      %p56 = scmp.ne.s32.totalorder %s39, %s55
      %p57 = scmp.eq.s32.totalorder %s31, 0
      %p58 = por %p56, %p57
      %s60 = sadd.s32 %s59, 1
      %p63 = scmp.eq.s32.totalorder %s25, 1
      %p64 = scmp.ne.s32.totalorder %s59, %s61
      %p65 = scmp.eq.s32.totalorder %s25, 0
      %p66 = por %p64, %p65
      %p67 = scmp.ne.s32.totalorder %s59, %s61
      %p68 = scmp.eq.s32.totalorder %s30, 1
      %p69 = por %p67, %p68
      %p70 = scmp.ne.s32.totalorder %s61, %s62
      %p71 = scmp.eq.s32.totalorder %s30, 0
      %p72 = por %p70, %p71
      %p73 = scmp.ne.s32.totalorder %s61, %s62
      %p74 = scmp.eq.s32.totalorder %s31, 1
      %p75 = por %p73, %p74
      %p77 = scmp.ne.s32.totalorder %s62, %s76
      %p78 = scmp.eq.s32.totalorder %s31, 0
      %p79 = por %p77, %p78
      %s81 = sadd.s32 %s80, 1
      %p84 = scmp.eq.s32.totalorder %s25, 1
      %p85 = scmp.ne.s32.totalorder %s80, %s82
      %p86 = scmp.eq.s32.totalorder %s25, 0
      %p87 = por %p85, %p86
      %p88 = scmp.ne.s32.totalorder %s80, %s82
      %p89 = scmp.eq.s32.totalorder %s30, 1
      %p90 = por %p88, %p89
      %p91 = scmp.ne.s32.totalorder %s82, %s83
      %p92 = scmp.eq.s32.totalorder %s30, 0
      %p93 = por %p91, %p92
      %p94 = scmp.ne.s32.totalorder %s82, %s83
      %p95 = scmp.eq.s32.totalorder %s31, 1
      %p96 = por %p94, %p95
      %p98 = scmp.ne.s32.totalorder %s83, %s97
      %p99 = scmp.eq.s32.totalorder %s31, 0
      %p100 = por %p98, %p99
      %s102 = sadd.s32 %s101, 1
      %p105 = scmp.eq.s32.totalorder %s25, 1
      %p106 = scmp.ne.s32.totalorder %s101, %s103
      %p107 = scmp.eq.s32.totalorder %s25, 0
      %p108 = por %p106, %p107
      %p109 = scmp.ne.s32.totalorder %s101, %s103
      %p110 = scmp.eq.s32.totalorder %s30, 1
      %p111 = por %p109, %p110
      %p112 = scmp.ne.s32.totalorder %s103, %s104
      %p113 = scmp.eq.s32.totalorder %s30, 0
      %p114 = por %p112, %p113
      %p115 = scmp.ne.s32.totalorder %s103, %s104
      %p116 = scmp.eq.s32.totalorder %s31, 1
      %p117 = por %p115, %p116
      %p119 = scmp.ne.s32.totalorder %s104, %s118
      %p120 = scmp.eq.s32.totalorder %s31, 0
      %p121 = por %p119, %p120
      %s123 = sadd.s32 %s122, 1
      %p126 = scmp.eq.s32.totalorder %s25, 1
      %p127 = scmp.ne.s32.totalorder %s122, %s124
      %p128 = scmp.eq.s32.totalorder %s25, 0
      %p129 = por %p127, %p128
      %p130 = scmp.ne.s32.totalorder %s122, %s124
      %p131 = scmp.eq.s32.totalorder %s30, 1
      %p132 = por %p130, %p131
      %p133 = scmp.ne.s32.totalorder %s124, %s125
      %p134 = scmp.eq.s32.totalorder %s30, 0
      %p135 = por %p133, %p134
      %p136 = scmp.ne.s32.totalorder %s124, %s125
      %p137 = scmp.eq.s32.totalorder %s31, 1
      %p138 = por %p136, %p137
      %p140 = scmp.ne.s32.totalorder %s125, %s139
      %p141 = scmp.eq.s32.totalorder %s31, 0
      %p142 = por %p140, %p141
      %s144 = sadd.s32 %s143, 1
      %p147 = scmp.eq.s32.totalorder %s25, 1
      %p148 = scmp.ne.s32.totalorder %s143, %s145
      %p149 = scmp.eq.s32.totalorder %s25, 0
      %p150 = por %p148, %p149
      %p151 = scmp.ne.s32.totalorder %s143, %s145
      %p152 = scmp.eq.s32.totalorder %s30, 1
      %p153 = por %p151, %p152
      %p154 = scmp.ne.s32.totalorder %s145, %s146
      %p155 = scmp.eq.s32.totalorder %s30, 0
      %p156 = por %p154, %p155
      %p157 = scmp.ne.s32.totalorder %s145, %s146
      %p158 = scmp.eq.s32.totalorder %s31, 1
      %p159 = por %p157, %p158
      %p161 = scmp.ne.s32.totalorder %s146, %s160
      %p162 = scmp.eq.s32.totalorder %s31, 0
      %p163 = por %p161, %p162
      %s165 = sadd.s32 %s164, 1
      %p168 = scmp.eq.s32.totalorder %s25, 1
      %p169 = scmp.ne.s32.totalorder %s164, %s166
      %p170 = scmp.eq.s32.totalorder %s25, 0
      %p171 = por %p169, %p170
      %p172 = scmp.ne.s32.totalorder %s164, %s166
      %p173 = scmp.eq.s32.totalorder %s30, 1
      %p174 = por %p172, %p173
      %p175 = scmp.ne.s32.totalorder %s166, %s167
      %p176 = scmp.eq.s32.totalorder %s30, 0
      %p177 = por %p175, %p176
      %p178 = scmp.ne.s32.totalorder %s166, %s167
      %p179 = scmp.eq.s32.totalorder %s31, 1
      %p180 = por %p178, %p179
      %p182 = scmp.ne.s32.totalorder %s167, %s181
      %p183 = scmp.eq.s32.totalorder %s31, 0
      %p184 = por %p182, %p183
      %s186 = sadd.s32 %s185, 1
      %p189 = scmp.eq.s32.totalorder %s25, 1
      %p190 = scmp.ne.s32.totalorder %s185, %s187
      %p191 = scmp.eq.s32.totalorder %s25, 0
      %p192 = por %p190, %p191
      %p193 = scmp.ne.s32.totalorder %s185, %s187
      %p194 = scmp.eq.s32.totalorder %s30, 1
      %p195 = por %p193, %p194
      %p196 = scmp.ne.s32.totalorder %s187, %s188
      %p197 = scmp.eq.s32.totalorder %s30, 0
      %p198 = por %p196, %p197
      %p199 = scmp.ne.s32.totalorder %s187, %s188
      %p200 = scmp.eq.s32.totalorder %s31, 1
      %p201 = por %p199, %p200
      %p203 = scmp.ne.s32.totalorder %s188, %s202
      %p204 = scmp.eq.s32.totalorder %s31, 0
      %p205 = por %p203, %p204
      %s207 = sadd.s32 %s206, 1
      %p210 = scmp.eq.s32.totalorder %s25, 1
      %p211 = scmp.ne.s32.totalorder %s206, %s208
      %p212 = scmp.eq.s32.totalorder %s25, 0
      %p213 = por %p211, %p212
      %p214 = scmp.ne.s32.totalorder %s206, %s208
      %p215 = scmp.eq.s32.totalorder %s30, 1
      %p216 = por %p214, %p215
      %p217 = scmp.ne.s32.totalorder %s208, %s209
      %p218 = scmp.eq.s32.totalorder %s30, 0
      %p219 = por %p217, %p218
      %p220 = scmp.ne.s32.totalorder %s208, %s209
      %p221 = scmp.eq.s32.totalorder %s31, 1
      %p222 = por %p220, %p221
      %p224 = scmp.ne.s32.totalorder %s209, %s223
      %p225 = scmp.eq.s32.totalorder %s31, 0
      %p226 = por %p224, %p225
      %s228 = sadd.s32 %s227, 1
      %p231 = scmp.eq.s32.totalorder %s25, 1
      %p232 = scmp.ne.s32.totalorder %s227, %s229
      %p233 = scmp.eq.s32.totalorder %s25, 0
      %p234 = por %p232, %p233
      %p235 = scmp.ne.s32.totalorder %s227, %s229
      %p236 = scmp.eq.s32.totalorder %s30, 1
      %p237 = por %p235, %p236
      %p238 = scmp.ne.s32.totalorder %s229, %s230
      %p239 = scmp.eq.s32.totalorder %s30, 0
      %p240 = por %p238, %p239
      %p241 = scmp.ne.s32.totalorder %s229, %s230
      %p242 = scmp.eq.s32.totalorder %s31, 1
      %p243 = por %p241, %p242
      %p245 = scmp.ne.s32.totalorder %s230, %s244
      %p246 = scmp.eq.s32.totalorder %s31, 0
      %p247 = por %p245, %p246
      %s249 = sadd.s32 %s248, 1
      %p252 = scmp.eq.s32.totalorder %s25, 1
      %p253 = scmp.ne.s32.totalorder %s248, %s250
      %p254 = scmp.eq.s32.totalorder %s25, 0
      %p255 = por %p253, %p254
      %p256 = scmp.ne.s32.totalorder %s248, %s250
      %p257 = scmp.eq.s32.totalorder %s30, 1
      %p258 = por %p256, %p257
      %p259 = scmp.ne.s32.totalorder %s250, %s251
      %p260 = scmp.eq.s32.totalorder %s30, 0
      %p261 = por %p259, %p260
      %p262 = scmp.ne.s32.totalorder %s250, %s251
      %p263 = scmp.eq.s32.totalorder %s31, 1
      %p264 = por %p262, %p263
      %p266 = scmp.ne.s32.totalorder %s251, %s265
      %p267 = scmp.eq.s32.totalorder %s31, 0
      %p268 = por %p266, %p267
      %s270 = sadd.s32 %s269, 1
      %p273 = scmp.eq.s32.totalorder %s25, 1
      %p274 = scmp.ne.s32.totalorder %s269, %s271
      %p275 = scmp.eq.s32.totalorder %s25, 0
      %p276 = por %p274, %p275
      %p277 = scmp.ne.s32.totalorder %s269, %s271
      %p278 = scmp.eq.s32.totalorder %s30, 1
      %p279 = por %p277, %p278
      %p280 = scmp.ne.s32.totalorder %s271, %s272
      %p281 = scmp.eq.s32.totalorder %s30, 0
      %p282 = por %p280, %p281
      %p283 = scmp.ne.s32.totalorder %s271, %s272
      %p284 = scmp.eq.s32.totalorder %s31, 1
      %p285 = por %p283, %p284
      %p287 = scmp.ne.s32.totalorder %s272, %s286
      %p288 = scmp.eq.s32.totalorder %s31, 0
      %p289 = por %p287, %p288
      %s291 = sadd.s32 %s290, 1
      %p294 = scmp.eq.s32.totalorder %s25, 1
      %p295 = scmp.ne.s32.totalorder %s290, %s292
      %p296 = scmp.eq.s32.totalorder %s25, 0
      %p297 = por %p295, %p296
      %p298 = scmp.ne.s32.totalorder %s290, %s292
      %p299 = scmp.eq.s32.totalorder %s30, 1
      %p300 = por %p298, %p299
      %p301 = scmp.ne.s32.totalorder %s292, %s293
      %p302 = scmp.eq.s32.totalorder %s30, 0
      %p303 = por %p301, %p302
      %p304 = scmp.ne.s32.totalorder %s292, %s293
      %p305 = scmp.eq.s32.totalorder %s31, 1
      %p306 = por %p304, %p305
      %p308 = scmp.ne.s32.totalorder %s293, %s307
      %p309 = scmp.eq.s32.totalorder %s31, 0
      %p310 = por %p308, %p309
      %s311 = ssub.s32 %s25, %s32
      %p312 = scmp.eq.s32.totalorder %s311, 0
      %s314 = sadd.s32 %s313, 1
      %s315 = scalar_select %p312, %s313, %s314
      %p318 = pneg %p312
      %p319 = scmp.eq.s32.totalorder %s25, 1
      %p320 = por %p318, %p319
      %p321 = scmp.ne.s32.totalorder %s313, %s316
      %p322 = scmp.eq.s32.totalorder %s25, 0
      %p323 = por %p321, %p322
      %p324 = scmp.ne.s32.totalorder %s313, %s316
      %p325 = scmp.eq.s32.totalorder %s30, 1
      %p326 = por %p324, %p325
      %p327 = scmp.ne.s32.totalorder %s316, %s317
      %p328 = scmp.eq.s32.totalorder %s30, 0
      %p329 = por %p327, %p328
      %p330 = scmp.ne.s32.totalorder %s316, %s317
      %p331 = scmp.eq.s32.totalorder %s31, 1
      %p332 = por %p330, %p331
      %p334 = scmp.ne.s32.totalorder %s317, %s333
      %p335 = scmp.eq.s32.totalorder %s31, 0
      %p336 = por %p334, %p335
      %p337 = scmp.le.s32.totalorder 1, %s25
      %p338 = scmp.lt.s32.totalorder %s25, 3
      %p339 = pnand %p337, %p338
      %p340 = pneg %p339
      // Predicated region
      $region9: #{tpu_custom_call.1} parent=5 // pred_check
        _
      $region10: #{tpu_custom_call.1} parent=5 // pred_check_branch
        %342 = sbr.rel (%p339) target = $region12
      $region11: #{tpu_custom_call.1} parent=5 // pred_region
        %s343 = ssub.s32 %s25, 1
        // Predicated region
        $region13: #{tpu_custom_call.1} parent=11 // pred_check
          %p344 = pneg %p72
        $region14: #{tpu_custom_call.1} parent=11 // pred_check_branch
          %346 = sbr.rel (%p344) target = $region16
        $region15: #{tpu_custom_call.1} parent=11 // pred_region
          _
        $region16: #{tpu_custom_call.1} parent=11 // pred_fallthru
          _
        // Predicated region
        $region17: #{tpu_custom_call.1} parent=11 // pred_check
          %p347 = pneg %p93
        $region18: #{tpu_custom_call.1} parent=11 // pred_check_branch
          %349 = sbr.rel (%p347) target = $region20
        $region19: #{tpu_custom_call.1} parent=11 // pred_region
          _
        $region20: #{tpu_custom_call.1} parent=11 // pred_fallthru
          _
        // Predicated region
        $region21: #{tpu_custom_call.1} parent=11 // pred_check
          %p350 = pneg %p114
        $region22: #{tpu_custom_call.1} parent=11 // pred_check_branch
          %352 = sbr.rel (%p350) target = $region24
        $region23: #{tpu_custom_call.1} parent=11 // pred_region
          _
        $region24: #{tpu_custom_call.1} parent=11 // pred_fallthru
          _
        // Predicated region
        $region25: #{tpu_custom_call.1} parent=11 // pred_check
          %p353 = pneg %p135
        $region26: #{tpu_custom_call.1} parent=11 // pred_check_branch
          %355 = sbr.rel (%p353) target = $region28
        $region27: #{tpu_custom_call.1} parent=11 // pred_region
          _
        $region28: #{tpu_custom_call.1} parent=11 // pred_fallthru
          _
        // Predicated region
        $region29: #{tpu_custom_call.1} parent=11 // pred_check
          %p356 = pneg %p156
        $region30: #{tpu_custom_call.1} parent=11 // pred_check_branch
          %358 = sbr.rel (%p356) target = $region32
        $region31: #{tpu_custom_call.1} parent=11 // pred_region
          _
        $region32: #{tpu_custom_call.1} parent=11 // pred_fallthru
          _
        // Predicated region
        $region33: #{tpu_custom_call.1} parent=11 // pred_check
          %p359 = pneg %p177
        $region34: #{tpu_custom_call.1} parent=11 // pred_check_branch
          %361 = sbr.rel (%p359) target = $region36
        $region35: #{tpu_custom_call.1} parent=11 // pred_region
          _
        $region36: #{tpu_custom_call.1} parent=11 // pred_fallthru
          _
        // Predicated region
        $region37: #{tpu_custom_call.1} parent=11 // pred_check
          %p362 = pneg %p198
        $region38: #{tpu_custom_call.1} parent=11 // pred_check_branch
          %364 = sbr.rel (%p362) target = $region40
        $region39: #{tpu_custom_call.1} parent=11 // pred_region
          %s366 = ssub.s32 16, 16
          %367 = vsyncadd [#allocation3], %s366
          %s369 = sshll.u32 [#allocation2], 4
          %s370 = int_to_ptr.vmem [resolvable:$true] %s369
          %372 = dma.hbm_to_vmem [thread:$0]  %s7, 16, %s370, [#allocation3]
        $region40: #{tpu_custom_call.1} parent=11 // pred_fallthru
          _
        // Predicated region
        $region41: #{tpu_custom_call.1} parent=11 // pred_check
          %p373 = pneg %p219
        $region42: #{tpu_custom_call.1} parent=11 // pred_check_branch
          %375 = sbr.rel (%p373) target = $region44
        $region43: #{tpu_custom_call.1} parent=11 // pred_region
          %s377 = ssub.s32 16, 16
          %378 = vsyncadd [#allocation6], %s377
          %s380 = sshll.u32 [#allocation5], 4
          %s381 = int_to_ptr.vmem [resolvable:$true] %s380
          %383 = dma.hbm_to_vmem [thread:$0]  %s8, 16, %s381, [#allocation6]
        $region44: #{tpu_custom_call.1} parent=11 // pred_fallthru
          _
        // Predicated region
        $region45: #{tpu_custom_call.1} parent=11 // pred_check
          %p384 = pneg %p240
        $region46: #{tpu_custom_call.1} parent=11 // pred_check_branch
          %386 = sbr.rel (%p384) target = $region48
        $region47: #{tpu_custom_call.1} parent=11 // pred_region
          %s388 = ssub.s32 256, 256
          %389 = vsyncadd [#allocation6], %s388
          %s390 = sshll.u32 [#allocation7], 4
          %s391 = int_to_ptr.vmem [resolvable:$true] %s390
          %396 = dma.hbm_to_vmem [thread:$0]  %s9, 256, %s391, [#allocation6], 64, 64, 4
        $region48: #{tpu_custom_call.1} parent=11 // pred_fallthru
          _
        // Predicated region
        $region49: #{tpu_custom_call.1} parent=11 // pred_check
          %p397 = pneg %p261
        $region50: #{tpu_custom_call.1} parent=11 // pred_check_branch
          %399 = sbr.rel (%p397) target = $region52
        $region51: #{tpu_custom_call.1} parent=11 // pred_region
          %s401 = ssub.s32 16, 16
          %402 = vsyncadd [#allocation9], %s401
          %s404 = sshll.u32 [#allocation8], 4
          %s405 = int_to_ptr.vmem [resolvable:$true] %s404
          %407 = dma.hbm_to_vmem [thread:$0]  %s10, 16, %s405, [#allocation9]
        $region52: #{tpu_custom_call.1} parent=11 // pred_fallthru
          _
        // Predicated region
        $region53: #{tpu_custom_call.1} parent=11 // pred_check
          %p408 = pneg %p282
        $region54: #{tpu_custom_call.1} parent=11 // pred_check_branch
          %410 = sbr.rel (%p408) target = $region56
        $region55: #{tpu_custom_call.1} parent=11 // pred_region
          _
        $region56: #{tpu_custom_call.1} parent=11 // pred_fallthru
          _
        // Predicated region
        $region57: #{tpu_custom_call.1} parent=11 // pred_check
          %p411 = pneg %p303
        $region58: #{tpu_custom_call.1} parent=11 // pred_check_branch
          %413 = sbr.rel (%p411) target = $region60
        $region59: #{tpu_custom_call.1} parent=11 // pred_region
          _
        $region60: #{tpu_custom_call.1} parent=11 // pred_fallthru
          _
      $region12: #{tpu_custom_call.1} parent=5 // pred_fallthru
        _
      %p414 = scmp.lt.s32.totalorder %s25, 2
      // Predicated region
      $region61: #{tpu_custom_call.1} parent=5 // pred_check
        %p415 = pneg %p414
      $region62: #{tpu_custom_call.1} parent=5 // pred_check_branch
        %417 = sbr.rel (%p415) target = $region64
      $region63: #{tpu_custom_call.1} parent=5 // pred_region
        // Predicated region
        $region65: #{tpu_custom_call.1} parent=63 // pred_check
          %p418 = pneg %p45
        $region66: #{tpu_custom_call.1} parent=63 // pred_check_branch
          %420 = sbr.rel (%p418) target = $region68
        $region67: #{tpu_custom_call.1} parent=63 // pred_region
          %p421 = scmp.lt.s32.totalorder %s25, 1
          %s422 = scalar_select %p421, %s25, 1
          %s423 = smul.addr %s422, 8
          %s424 = scalar_lea.vmem %s0, %s423
        $region68: #{tpu_custom_call.1} parent=63 // pred_fallthru
          _
      $region64: #{tpu_custom_call.1} parent=5 // pred_fallthru
        _
      %p425 = scmp.le.s32.totalorder 1, %s25
      %p426 = scmp.lt.s32.totalorder %s25, 3
      %p427 = pnand %p425, %p426
      %p428 = pneg %p427
      // Predicated region
      $region69: #{tpu_custom_call.1} parent=5 // pred_check
        _
      $region70: #{tpu_custom_call.1} parent=5 // pred_check_branch
        %430 = sbr.rel (%p427) target = $region72
      $region71: #{tpu_custom_call.1} parent=5 // pred_region
        %s431 = ssub.s32 %s25, 1
        // Predicated region
        $region73: #{tpu_custom_call.1} parent=71 // pred_check
          %p432 = pneg %p198
        $region74: #{tpu_custom_call.1} parent=71 // pred_check_branch
          %434 = sbr.rel (%p432) target = $region76
        $region75: #{tpu_custom_call.1} parent=71 // pred_region
          %435 = dma.done [#allocation3], 16
        $region76: #{tpu_custom_call.1} parent=71 // pred_fallthru
          _
        // Predicated region
        $region77: #{tpu_custom_call.1} parent=71 // pred_check
          %p436 = pneg %p219
        $region78: #{tpu_custom_call.1} parent=71 // pred_check_branch
          %438 = sbr.rel (%p436) target = $region80
        $region79: #{tpu_custom_call.1} parent=71 // pred_region
          %439 = dma.done [#allocation6], 16
        $region80: #{tpu_custom_call.1} parent=71 // pred_fallthru
          _
        // Predicated region
        $region81: #{tpu_custom_call.1} parent=71 // pred_check
          %p440 = pneg %p240
        $region82: #{tpu_custom_call.1} parent=71 // pred_check_branch
          %442 = sbr.rel (%p440) target = $region84
        $region83: #{tpu_custom_call.1} parent=71 // pred_region
          %443 = dma.done [#allocation6], 256
        $region84: #{tpu_custom_call.1} parent=71 // pred_fallthru
          _
        // Predicated region
        $region85: #{tpu_custom_call.1} parent=71 // pred_check
          %p444 = pneg %p261
        $region86: #{tpu_custom_call.1} parent=71 // pred_check_branch
          %446 = sbr.rel (%p444) target = $region88
        $region87: #{tpu_custom_call.1} parent=71 // pred_region
          %447 = dma.done [#allocation9], 16
        $region88: #{tpu_custom_call.1} parent=71 // pred_fallthru
          _
        %p448 = scmp.lt.s32.totalorder %s30, 1
        %s449 = scalar_select %p448, %s30, 1
        %s450 = smul.addr %s449, 8
        %s451 = scalar_lea.vmem %s0, %s450
        %p452 = pneg %p51
        %p453 = pneg %p48
        %p454 = pneg %p72
        %p455 = pneg %p69
        %p456 = pneg %p93
        %p457 = pneg %p90
        %p458 = pneg %p114
        %p459 = pneg %p111
        %p460 = pneg %p135
        %p461 = pneg %p132
        %p462 = pneg %p156
        %p463 = pneg %p153
        %p464 = pneg %p177
        %p465 = pneg %p174
        %p466 = pneg %p198
        %p467 = pneg %p195
        %p468 = pneg %p219
        %p469 = pneg %p216
        %p470 = pneg %p240
        %p471 = pneg %p237
        %p472 = pneg %p261
        %p473 = pneg %p258
        %p474 = pneg %p282
        %p475 = pneg %p279
        %p476 = pneg %p303
        %p477 = pneg %p300
        %p478 = pneg %p329
        %p479 = pneg %p326
        %s480 = sand.u32 %s316, 1
        %s481 = scalar_lea.sflag [#allocation4], %s480
        %s482 = sand.u32 %s316, 1
        %s483 = smul.addr %s482, 8
        %s484 = scalar_lea.vmem [#allocation10], %s483
        %p485 = scmp.lt.s32.totalorder %s30, 1
        %s486 = scalar_select %p485, %s30, 1
        %s487 = smul.addr %s486, 8
        %s488 = scalar_lea.vmem %s0, %s487
        %v490 = vld [vmem:[%s488] sm:$0xff]
        %v491 = vld [vmem:[%s1] sm:$0x1]
        %v492 = vld [vmem:[%s2] sm:$0x1]
        %vm493 = vcmask 261120
        %v494 = vsel %vm493, %v490, 0.0
        %495 = vadd.xlane.f32.xlu0 %v494
        %v496 = vpop.xlane.xlu0 %495
        %v497 = vrcp.pop 32.0
        %v498 = vmul.f32 %v496, %v497
        %v499 = vsub.f32 %v490, %v498
        %v500 = vmul.f32 %v499, %v499
        %v501 = vsel %vm493, %v500, 0.0
        %502 = vadd.xlane.f32.xlu0 %v501
        %v503 = vpop.xlane.xlu0 %502
        %v504 = vmul.f32 %v503, %v497
        %v505 = vadd.f32 %v504, 1e-05
        %v506 = vrsqrt.pop %v505
        %v507 = vmul.f32 %v499, %v506
        %v509 = vlaneseq
        %v510 = vshrl.u32 %v509, 7
        %v511 = vsub.s32 0, %v510
        %v512 = vrot.slane %v491, %v511
        %v514 = vmul.f32 %v507, %v512
        %v516 = vlaneseq
        %v517 = vshrl.u32 %v516, 7
        %v518 = vsub.s32 0, %v517
        %v519 = vrot.slane %v492, %v518
        %v521 = vadd.f32 %v514, %v519
        %v522 = vpack.c.bf16 %v521, %v521
        %v523 = vld [vmem:[%s3] sm:$0xf]
        %v524 = vld [vmem:[%s3 + $0x4] sm:$0xf]
        %v525 = vld [vmem:[%s3 + $0x8] sm:$0xf]
        %v526 = vld [vmem:[%s3 + $0xc] sm:$0xf]
        %v527 = vld [vmem:[%s4] sm:$0x1]
        %v529 = vlaneseq
        %v530 = vshrl.u32 %v529, 7
        %v531 = vsub.s32 0, %v530
        %v532 = vrot.slane %v527, %v531
        %v538 = vunpack.c.l.b16 %v523
        %v539 = vunpack.c.l.b16 %v524
        %v540 = vunpack.c.l.b16 %v525
        %v541 = vunpack.c.l.b16 %v526
        %v542 = vpack.c.b16 %v539, %v538
        %v543 = vpack.c.b16 %v541, %v540
        %v547 = vsel %vm493, %v522, 0
        %549 = vmatprep.subr.bf16.mxu0 0
        %550 = vmatpush1.bf16.msra.mxu0 0
        %551 = vmatprep.subr.bf16.mxu0 0
        %552 = vmatpush1.bf16.msra.mxu0 0
        %553 = vmatprep.subr.bf16.mxu0 0
        %554 = vmatpush1.bf16.msra.mxu0 0
        %555 = vmatprep.subr.bf16.mxu0 0
        %556 = vmatpush1.bf16.msra.mxu0 0
        %557 = vmatprep.subr.bf16.mxu0 0
        %558 = vmatpush1.bf16.msra.mxu0 0
        %559 = vmatprep.subr.bf16.mxu0 0
        %560 = vmatpush1.bf16.msra.mxu0 0
        %561 = vmatprep.subr.bf16.mxu0 0
        %562 = vmatpush1.bf16.msra.mxu0 %v543
        %563 = vmatprep.subr.bf16.mxu0 0
        %564 = vmatpush1.bf16.msra.mxu0 %v542
        %565 = vmatprep.subr.bf16.mxu0 0
        %566 = vmatpush2.bf16.msra.mxu0 0
        %567 = vmatprep.subr.bf16.mxu0 0
        %568 = vmatpush2.bf16.msra.mxu0 0
        %569 = vmatprep.subr.bf16.mxu0 0
        %570 = vmatpush2.bf16.msra.mxu0 0
        %571 = vmatprep.subr.bf16.mxu0 0
        %572 = vmatpush2.bf16.msra.mxu0 0
        %573 = vmatprep.subr.bf16.mxu0 0
        %574 = vmatpush2.bf16.msra.mxu0 0
        %575 = vmatprep.subr.bf16.mxu0 0
        %576 = vmatpush2.bf16.msra.mxu0 0
        %577 = vmatprep.subr.bf16.mxu0 0
        %578 = vmatpush2.bf16.msra.mxu0 0
        %579 = vmatprep.subr.bf16.mxu0 0
        %580 = vmatpush2.bf16.msra.mxu0 0
        %581 = vmatprep.mubr.bf16.mxu0 0
        %582 = vmatmul.mubr.bf16.gmra.mxu0 %v547
        %v583 = vpop.f32.mrf.mxu0
        %v584 = vadd.f32 %v532, %v583
        %v585 = vpop.f32.mrf.mxu0
        %v586 = vpop.f32.mrf.mxu0
        %v587 = vpop.f32.mrf.mxu0
        %588 = vdwg.mxu0
        %v589 = vld [vmem:[%s5] sm:$0xf]
        %v590 = vld [vmem:[%s5 + $0x4] sm:$0xf]
        %v591 = vld [vmem:[%s5 + $0x8] sm:$0xf]
        %v592 = vld [vmem:[%s5 + $0xc] sm:$0xf]
        %v593 = vunpack.c.l.bf16 %v589
        %v594 = vunpack.c.l.bf16 %v590
        %v595 = vunpack.c.l.bf16 %v591
        %v596 = vunpack.c.l.bf16 %v592
        %v597 = vmul.f32 %v584, 0.35355338
        %v598 = vpack.c.bf16 %v597, %v597
        %v599 = vpack.c.bf16 %v584, %v584
        %601 = vrot.lane.b32.xlu0 %v599, 96
        %v602 = vpop.permute.xlu0 %601
        %vm603 = vcmask 64512
        %v605 = vsel %vm603, %v598, 0
        %v608 = vsel %vm603, %v602, 0
        %610 = vmatprep.subr.bf16.mxu0 0
        %611 = vmatpush1.bf16.xpose.msra.mxu0 0
        %612 = vmatprep.subr.bf16.mxu0 0
        %613 = vmatpush1.bf16.xpose.msra.mxu0 0
        %614 = vmatprep.subr.bf16.mxu0 0
        %615 = vmatpush1.bf16.xpose.msra.mxu0 0
        %616 = vmatprep.subr.bf16.mxu0 0
        %617 = vmatpush1.bf16.xpose.msra.mxu0 0
        %618 = vmatprep.subr.bf16.mxu0 0
        %619 = vmatpush1.bf16.xpose.msra.mxu0 0
        %620 = vmatprep.subr.bf16.mxu0 0
        %621 = vmatpush1.bf16.xpose.msra.mxu0 0
        %622 = vmatprep.subr.bf16.mxu0 0
        %623 = vmatpush1.bf16.xpose.msra.mxu0 0
        %624 = vmatprep.subr.bf16.mxu0 0
        %625 = vmatpush1.bf16.xpose.msra.mxu0 %v608
        %626 = vmatprep.subr.bf16.mxu0 0
        %627 = vmatpush2.bf16.xpose.msra.mxu0 0
        %628 = vmatprep.subr.bf16.mxu0 0
        %629 = vmatpush2.bf16.xpose.msra.mxu0 0
        %630 = vmatprep.subr.bf16.mxu0 0
        %631 = vmatpush2.bf16.xpose.msra.mxu0 0
        %632 = vmatprep.subr.bf16.mxu0 0
        %633 = vmatpush2.bf16.xpose.msra.mxu0 0
        %634 = vmatprep.subr.bf16.mxu0 0
        %635 = vmatpush2.bf16.xpose.msra.mxu0 0
        %636 = vmatprep.subr.bf16.mxu0 0
        %637 = vmatpush2.bf16.xpose.msra.mxu0 0
        %638 = vmatprep.subr.bf16.mxu0 0
        %639 = vmatpush2.bf16.xpose.msra.mxu0 0
        %640 = vmatprep.subr.bf16.mxu0 0
        %641 = vmatpush2.bf16.xpose.msra.mxu0 0
        %642 = vmatprep.mubr.bf16.mxu0 0
        %643 = vmatmul.mubr.bf16.gmra.mxu0 %v605
        %v644 = vpop.f32.mrf.mxu0
        %v645 = vadd.f32 0.0, %v644
        %v646 = vpop.f32.mrf.mxu0
        %v647 = vpop.f32.mrf.mxu0
        %v648 = vpop.f32.mrf.mxu0
        %649 = vdwg.mxu0
        %v650 = vsel %vm603, %v645, -inf
        %651 = vmax.xlane.f32.xlu0 %v650
        %v652 = vpop.xlane.xlu0 %651
        %v653 = vsub.f32 %v645, %v652
        %v654 = vmul.f32 %v653, 1.442695
        %v655 = vpow.pop %v654
        %v656 = vsel %vm603, %v655, 0.0
        %657 = vadd.xlane.f32.xlu0 %v656
        %v658 = vpop.xlane.xlu0 %657
        %v659 = vrcp.pop %v658
        %v660 = vmul.f32 %v655, %v659
        %v661 = vpack.c.bf16 %v660, %v660
        %662 = vrot.lane.b32.xlu0 %v599, 64
        %v663 = vpop.permute.xlu0 %662
        %v665 = vsel %vm603, %v661, 0
        %vm667 = vcmask 1043456
        %v669 = vsel %vm667, %v663, 0
        %671 = vmatprep.subr.bf16.mxu0 0
        %672 = vmatpush1.bf16.msra.mxu0 0
        %673 = vmatprep.subr.bf16.mxu0 0
        %674 = vmatpush1.bf16.msra.mxu0 0
        %675 = vmatprep.subr.bf16.mxu0 0
        %676 = vmatpush1.bf16.msra.mxu0 0
        %677 = vmatprep.subr.bf16.mxu0 0
        %678 = vmatpush1.bf16.msra.mxu0 0
        %679 = vmatprep.subr.bf16.mxu0 0
        %680 = vmatpush1.bf16.msra.mxu0 0
        %681 = vmatprep.subr.bf16.mxu0 0
        %682 = vmatpush1.bf16.msra.mxu0 0
        %683 = vmatprep.subr.bf16.mxu0 0
        %684 = vmatpush1.bf16.msra.mxu0 0
        %685 = vmatprep.subr.bf16.mxu0 0
        %686 = vmatpush1.bf16.msra.mxu0 %v669
        %687 = vmatprep.subr.bf16.mxu0 0
        %688 = vmatpush2.bf16.msra.mxu0 0
        %689 = vmatprep.subr.bf16.mxu0 0
        %690 = vmatpush2.bf16.msra.mxu0 0
        %691 = vmatprep.subr.bf16.mxu0 0
        %692 = vmatpush2.bf16.msra.mxu0 0
        %693 = vmatprep.subr.bf16.mxu0 0
        %694 = vmatpush2.bf16.msra.mxu0 0
        %695 = vmatprep.subr.bf16.mxu0 0
        %696 = vmatpush2.bf16.msra.mxu0 0
        %697 = vmatprep.subr.bf16.mxu0 0
        %698 = vmatpush2.bf16.msra.mxu0 0
        %699 = vmatprep.subr.bf16.mxu0 0
        %700 = vmatpush2.bf16.msra.mxu0 0
        %701 = vmatprep.subr.bf16.mxu0 0
        %702 = vmatpush2.bf16.msra.mxu0 0
        %703 = vmatprep.mubr.bf16.mxu0 0
        %704 = vmatmul.mubr.bf16.gmra.mxu0 %v665
        %v705 = vpop.f32.mrf.mxu0
        %v706 = vadd.f32 0.0, %v705
        %v707 = vpop.f32.mrf.mxu0
        %v708 = vpop.f32.mrf.mxu0
        %v709 = vpop.f32.mrf.mxu0
        %710 = vdwg.mxu0
        %v711 = vpack.c.bf16 %v706, %v706
        %v712 = vpack.c.bf16 %v593, %v593
        %714 = vrot.lane.b32.xlu0 %v598, 120
        %v715 = vpop.permute.xlu0 %714
        %716 = vrot.lane.b32.xlu0 %v599, 88
        %v717 = vpop.permute.xlu0 %716
        %v719 = vsel %vm603, %v715, 0
        %v722 = vsel %vm603, %v717, 0
        %724 = vmatprep.subr.bf16.mxu0 0
        %725 = vmatpush1.bf16.xpose.msra.mxu0 0
        %726 = vmatprep.subr.bf16.mxu0 0
        %727 = vmatpush1.bf16.xpose.msra.mxu0 0
        %728 = vmatprep.subr.bf16.mxu0 0
        %729 = vmatpush1.bf16.xpose.msra.mxu0 0
        %730 = vmatprep.subr.bf16.mxu0 0
        %731 = vmatpush1.bf16.xpose.msra.mxu0 0
        %732 = vmatprep.subr.bf16.mxu0 0
        %733 = vmatpush1.bf16.xpose.msra.mxu0 0
        %734 = vmatprep.subr.bf16.mxu0 0
        %735 = vmatpush1.bf16.xpose.msra.mxu0 0
        %736 = vmatprep.subr.bf16.mxu0 0
        %737 = vmatpush1.bf16.xpose.msra.mxu0 0
        %738 = vmatprep.subr.bf16.mxu0 0
        %739 = vmatpush1.bf16.xpose.msra.mxu0 %v722
        %740 = vmatprep.subr.bf16.mxu0 0
        %741 = vmatpush2.bf16.xpose.msra.mxu0 0
        %742 = vmatprep.subr.bf16.mxu0 0
        %743 = vmatpush2.bf16.xpose.msra.mxu0 0
        %744 = vmatprep.subr.bf16.mxu0 0
        %745 = vmatpush2.bf16.xpose.msra.mxu0 0
        %746 = vmatprep.subr.bf16.mxu0 0
        %747 = vmatpush2.bf16.xpose.msra.mxu0 0
        %748 = vmatprep.subr.bf16.mxu0 0
        %749 = vmatpush2.bf16.xpose.msra.mxu0 0
        %750 = vmatprep.subr.bf16.mxu0 0
        %751 = vmatpush2.bf16.xpose.msra.mxu0 0
        %752 = vmatprep.subr.bf16.mxu0 0
        %753 = vmatpush2.bf16.xpose.msra.mxu0 0
        %754 = vmatprep.subr.bf16.mxu0 0
        %755 = vmatpush2.bf16.xpose.msra.mxu0 0
        %756 = vmatprep.mubr.bf16.mxu0 0
        %757 = vmatmul.mubr.bf16.gmra.mxu0 %v719
        %v758 = vpop.f32.mrf.mxu0
        %v759 = vadd.f32 0.0, %v758
        %v760 = vpop.f32.mrf.mxu0
        %v761 = vpop.f32.mrf.mxu0
        %v762 = vpop.f32.mrf.mxu0
        %763 = vdwg.mxu0
        %v764 = vsel %vm603, %v759, -inf
        %765 = vmax.xlane.f32.xlu0 %v764
        %v766 = vpop.xlane.xlu0 %765
        %v767 = vsub.f32 %v759, %v766
        %v768 = vmul.f32 %v767, 1.442695
        %v769 = vpow.pop %v768
        %v770 = vsel %vm603, %v769, 0.0
        %771 = vadd.xlane.f32.xlu0 %v770
        %v772 = vpop.xlane.xlu0 %771
        %v773 = vrcp.pop %v772
        %v774 = vmul.f32 %v769, %v773
        %v775 = vpack.c.bf16 %v774, %v774
        %776 = vrot.lane.b32.xlu0 %v599, 56
        %v777 = vpop.permute.xlu0 %776
        %v779 = vsel %vm603, %v775, 0
        %v782 = vsel %vm667, %v777, 0
        %784 = vmatprep.subr.bf16.mxu0 0
        %785 = vmatpush1.bf16.msra.mxu0 0
        %786 = vmatprep.subr.bf16.mxu0 0
        %787 = vmatpush1.bf16.msra.mxu0 0
        %788 = vmatprep.subr.bf16.mxu0 0
        %789 = vmatpush1.bf16.msra.mxu0 0
        %790 = vmatprep.subr.bf16.mxu0 0
        %791 = vmatpush1.bf16.msra.mxu0 0
        %792 = vmatprep.subr.bf16.mxu0 0
        %793 = vmatpush1.bf16.msra.mxu0 0
        %794 = vmatprep.subr.bf16.mxu0 0
        %795 = vmatpush1.bf16.msra.mxu0 0
        %796 = vmatprep.subr.bf16.mxu0 0
        %797 = vmatpush1.bf16.msra.mxu0 0
        %798 = vmatprep.subr.bf16.mxu0 0
        %799 = vmatpush1.bf16.msra.mxu0 %v782
        %800 = vmatprep.subr.bf16.mxu0 0
        %801 = vmatpush2.bf16.msra.mxu0 0
        %802 = vmatprep.subr.bf16.mxu0 0
        %803 = vmatpush2.bf16.msra.mxu0 0
        %804 = vmatprep.subr.bf16.mxu0 0
        %805 = vmatpush2.bf16.msra.mxu0 0
        %806 = vmatprep.subr.bf16.mxu0 0
        %807 = vmatpush2.bf16.msra.mxu0 0
        %808 = vmatprep.subr.bf16.mxu0 0
        %809 = vmatpush2.bf16.msra.mxu0 0
        %810 = vmatprep.subr.bf16.mxu0 0
        %811 = vmatpush2.bf16.msra.mxu0 0
        %812 = vmatprep.subr.bf16.mxu0 0
        %813 = vmatpush2.bf16.msra.mxu0 0
        %814 = vmatprep.subr.bf16.mxu0 0
        %815 = vmatpush2.bf16.msra.mxu0 0
        %816 = vmatprep.mubr.bf16.mxu0 0
        %817 = vmatmul.mubr.bf16.gmra.mxu0 %v779
        %v818 = vpop.f32.mrf.mxu0
        %v819 = vadd.f32 0.0, %v818
        %v820 = vpop.f32.mrf.mxu0
        %v821 = vpop.f32.mrf.mxu0
        %v822 = vpop.f32.mrf.mxu0
        %823 = vdwg.mxu0
        %v824 = vpack.c.bf16 %v819, %v819
        %v825 = vpack.c.bf16 %v594, %v594
        %v827 = vsel %vm603, %v824, 0
        %v830 = vsel %vm667, %v825, 0
        %832 = vmatprep.subr.bf16.mxu0 0
        %833 = vmatpush1.bf16.msra.mxu0 0
        %834 = vmatprep.subr.bf16.mxu0 0
        %835 = vmatpush1.bf16.msra.mxu0 0
        %836 = vmatprep.subr.bf16.mxu0 0
        %837 = vmatpush1.bf16.msra.mxu0 0
        %838 = vmatprep.subr.bf16.mxu0 0
        %839 = vmatpush1.bf16.msra.mxu0 0
        %840 = vmatprep.subr.bf16.mxu0 0
        %841 = vmatpush1.bf16.msra.mxu0 0
        %842 = vmatprep.subr.bf16.mxu0 0
        %843 = vmatpush1.bf16.msra.mxu0 0
        %844 = vmatprep.subr.bf16.mxu0 0
        %845 = vmatpush1.bf16.msra.mxu0 0
        %846 = vmatprep.subr.bf16.mxu0 0
        %847 = vmatpush1.bf16.msra.mxu0 %v830
        %848 = vmatprep.subr.bf16.mxu0 0
        %849 = vmatpush2.bf16.msra.mxu0 0
        %850 = vmatprep.subr.bf16.mxu0 0
        %851 = vmatpush2.bf16.msra.mxu0 0
        %852 = vmatprep.subr.bf16.mxu0 0
        %853 = vmatpush2.bf16.msra.mxu0 0
        %854 = vmatprep.subr.bf16.mxu0 0
        %855 = vmatpush2.bf16.msra.mxu0 0
        %856 = vmatprep.subr.bf16.mxu0 0
        %857 = vmatpush2.bf16.msra.mxu0 0
        %858 = vmatprep.subr.bf16.mxu0 0
        %859 = vmatpush2.bf16.msra.mxu0 0
        %860 = vmatprep.subr.bf16.mxu0 0
        %861 = vmatpush2.bf16.msra.mxu0 0
        %862 = vmatprep.subr.bf16.mxu0 0
        %863 = vmatpush2.bf16.msra.mxu0 0
        %864 = vmatprep.mubr.bf16.mxu0 0
        %865 = vmatmul.mubr.bf16.gmra.mxu0 %v827
        %v866 = vpop.f32.mrf.mxu0
        %v867 = vadd.f32 0.0, %v866
        %v868 = vpop.f32.mrf.mxu0
        %v869 = vpop.f32.mrf.mxu0
        %v870 = vpop.f32.mrf.mxu0
        %871 = vdwg.mxu0
        %v873 = vsel %vm603, %v711, 0
        %v876 = vsel %vm667, %v712, 0
        %878 = vmatprep.subr.bf16.mxu0 0
        %879 = vmatpush1.bf16.msra.mxu0 0
        %880 = vmatprep.subr.bf16.mxu0 0
        %881 = vmatpush1.bf16.msra.mxu0 0
        %882 = vmatprep.subr.bf16.mxu0 0
        %883 = vmatpush1.bf16.msra.mxu0 0
        %884 = vmatprep.subr.bf16.mxu0 0
        %885 = vmatpush1.bf16.msra.mxu0 0
        %886 = vmatprep.subr.bf16.mxu0 0
        %887 = vmatpush1.bf16.msra.mxu0 0
        %888 = vmatprep.subr.bf16.mxu0 0
        %889 = vmatpush1.bf16.msra.mxu0 0
        %890 = vmatprep.subr.bf16.mxu0 0
        %891 = vmatpush1.bf16.msra.mxu0 0
        %892 = vmatprep.subr.bf16.mxu0 0
        %893 = vmatpush1.bf16.msra.mxu0 %v876
        %894 = vmatprep.subr.bf16.mxu0 0
        %895 = vmatpush2.bf16.msra.mxu0 0
        %896 = vmatprep.subr.bf16.mxu0 0
        %897 = vmatpush2.bf16.msra.mxu0 0
        %898 = vmatprep.subr.bf16.mxu0 0
        %899 = vmatpush2.bf16.msra.mxu0 0
        %900 = vmatprep.subr.bf16.mxu0 0
        %901 = vmatpush2.bf16.msra.mxu0 0
        %902 = vmatprep.subr.bf16.mxu0 0
        %903 = vmatpush2.bf16.msra.mxu0 0
        %904 = vmatprep.subr.bf16.mxu0 0
        %905 = vmatpush2.bf16.msra.mxu0 0
        %906 = vmatprep.subr.bf16.mxu0 0
        %907 = vmatpush2.bf16.msra.mxu0 0
        %908 = vmatprep.subr.bf16.mxu0 0
        %909 = vmatpush2.bf16.msra.mxu0 0
        %910 = vmatprep.mubr.bf16.mxu0 0
        %911 = vmatmul.mubr.bf16.gmra.mxu0 %v873
        %v912 = vpop.f32.mrf.mxu0
        %v913 = vadd.f32 %v867, %v912
        %v914 = vpop.f32.mrf.mxu0
        %v915 = vpop.f32.mrf.mxu0
        %v916 = vpop.f32.mrf.mxu0
        %917 = vdwg.mxu0
        %918 = vrot.lane.b32.xlu0 %v598, 112
        %v919 = vpop.permute.xlu0 %918
        %920 = vrot.lane.b32.xlu0 %v599, 80
        %v921 = vpop.permute.xlu0 %920
        %v923 = vsel %vm603, %v919, 0
        %v926 = vsel %vm603, %v921, 0
        %928 = vmatprep.subr.bf16.mxu0 0
        %929 = vmatpush1.bf16.xpose.msra.mxu0 0
        %930 = vmatprep.subr.bf16.mxu0 0
        %931 = vmatpush1.bf16.xpose.msra.mxu0 0
        %932 = vmatprep.subr.bf16.mxu0 0
        %933 = vmatpush1.bf16.xpose.msra.mxu0 0
        %934 = vmatprep.subr.bf16.mxu0 0
        %935 = vmatpush1.bf16.xpose.msra.mxu0 0
        %936 = vmatprep.subr.bf16.mxu0 0
        %937 = vmatpush1.bf16.xpose.msra.mxu0 0
        %938 = vmatprep.subr.bf16.mxu0 0
        %939 = vmatpush1.bf16.xpose.msra.mxu0 0
        %940 = vmatprep.subr.bf16.mxu0 0
        %941 = vmatpush1.bf16.xpose.msra.mxu0 0
        %942 = vmatprep.subr.bf16.mxu0 0
        %943 = vmatpush1.bf16.xpose.msra.mxu0 %v926
        %944 = vmatprep.subr.bf16.mxu0 0
        %945 = vmatpush2.bf16.xpose.msra.mxu0 0
        %946 = vmatprep.subr.bf16.mxu0 0
        %947 = vmatpush2.bf16.xpose.msra.mxu0 0
        %948 = vmatprep.subr.bf16.mxu0 0
        %949 = vmatpush2.bf16.xpose.msra.mxu0 0
        %950 = vmatprep.subr.bf16.mxu0 0
        %951 = vmatpush2.bf16.xpose.msra.mxu0 0
        %952 = vmatprep.subr.bf16.mxu0 0
        %953 = vmatpush2.bf16.xpose.msra.mxu0 0
        %954 = vmatprep.subr.bf16.mxu0 0
        %955 = vmatpush2.bf16.xpose.msra.mxu0 0
        %956 = vmatprep.subr.bf16.mxu0 0
        %957 = vmatpush2.bf16.xpose.msra.mxu0 0
        %958 = vmatprep.subr.bf16.mxu0 0
        %959 = vmatpush2.bf16.xpose.msra.mxu0 0
        %960 = vmatprep.mubr.bf16.mxu0 0
        %961 = vmatmul.mubr.bf16.gmra.mxu0 %v923
        %v962 = vpop.f32.mrf.mxu0
        %v963 = vadd.f32 0.0, %v962
        %v964 = vpop.f32.mrf.mxu0
        %v965 = vpop.f32.mrf.mxu0
        %v966 = vpop.f32.mrf.mxu0
        %967 = vdwg.mxu0
        %v968 = vsel %vm603, %v963, -inf
        %969 = vmax.xlane.f32.xlu0 %v968
        %v970 = vpop.xlane.xlu0 %969
        %v971 = vsub.f32 %v963, %v970
        %v972 = vmul.f32 %v971, 1.442695
        %v973 = vpow.pop %v972
        %v974 = vsel %vm603, %v973, 0.0
        %975 = vadd.xlane.f32.xlu0 %v974
        %v976 = vpop.xlane.xlu0 %975
        %v977 = vrcp.pop %v976
        %v978 = vmul.f32 %v973, %v977
        %v979 = vpack.c.bf16 %v978, %v978
        %980 = vrot.lane.b32.xlu0 %v599, 48
        %v981 = vpop.permute.xlu0 %980
        %v983 = vsel %vm603, %v979, 0
        %v986 = vsel %vm667, %v981, 0
        %988 = vmatprep.subr.bf16.mxu0 0
        %989 = vmatpush1.bf16.msra.mxu0 0
        %990 = vmatprep.subr.bf16.mxu0 0
        %991 = vmatpush1.bf16.msra.mxu0 0
        %992 = vmatprep.subr.bf16.mxu0 0
        %993 = vmatpush1.bf16.msra.mxu0 0
        %994 = vmatprep.subr.bf16.mxu0 0
        %995 = vmatpush1.bf16.msra.mxu0 0
        %996 = vmatprep.subr.bf16.mxu0 0
        %997 = vmatpush1.bf16.msra.mxu0 0
        %998 = vmatprep.subr.bf16.mxu0 0
        %999 = vmatpush1.bf16.msra.mxu0 0
        %1000 = vmatprep.subr.bf16.mxu0 0
        %1001 = vmatpush1.bf16.msra.mxu0 0
        %1002 = vmatprep.subr.bf16.mxu0 0
        %1003 = vmatpush1.bf16.msra.mxu0 %v986
        %1004 = vmatprep.subr.bf16.mxu0 0
        %1005 = vmatpush2.bf16.msra.mxu0 0
        %1006 = vmatprep.subr.bf16.mxu0 0
        %1007 = vmatpush2.bf16.msra.mxu0 0
        %1008 = vmatprep.subr.bf16.mxu0 0
        %1009 = vmatpush2.bf16.msra.mxu0 0
        %1010 = vmatprep.subr.bf16.mxu0 0
        %1011 = vmatpush2.bf16.msra.mxu0 0
        %1012 = vmatprep.subr.bf16.mxu0 0
        %1013 = vmatpush2.bf16.msra.mxu0 0
        %1014 = vmatprep.subr.bf16.mxu0 0
        %1015 = vmatpush2.bf16.msra.mxu0 0
        %1016 = vmatprep.subr.bf16.mxu0 0
        %1017 = vmatpush2.bf16.msra.mxu0 0
        %1018 = vmatprep.subr.bf16.mxu0 0
        %1019 = vmatpush2.bf16.msra.mxu0 0
        %1020 = vmatprep.mubr.bf16.mxu0 0
        %1021 = vmatmul.mubr.bf16.gmra.mxu0 %v983
        %v1022 = vpop.f32.mrf.mxu0
        %v1023 = vadd.f32 0.0, %v1022
        %v1024 = vpop.f32.mrf.mxu0
        %v1025 = vpop.f32.mrf.mxu0
        %v1026 = vpop.f32.mrf.mxu0
        %1027 = vdwg.mxu0
        %v1028 = vpack.c.bf16 %v1023, %v1023
        %v1029 = vpack.c.bf16 %v595, %v595
        %v1031 = vsel %vm603, %v1028, 0
        %v1034 = vsel %vm667, %v1029, 0
        %1036 = vmatprep.subr.bf16.mxu0 0
        %1037 = vmatpush1.bf16.msra.mxu0 0
        %1038 = vmatprep.subr.bf16.mxu0 0
        %1039 = vmatpush1.bf16.msra.mxu0 0
        %1040 = vmatprep.subr.bf16.mxu0 0
        %1041 = vmatpush1.bf16.msra.mxu0 0
        %1042 = vmatprep.subr.bf16.mxu0 0
        %1043 = vmatpush1.bf16.msra.mxu0 0
        %1044 = vmatprep.subr.bf16.mxu0 0
        %1045 = vmatpush1.bf16.msra.mxu0 0
        %1046 = vmatprep.subr.bf16.mxu0 0
        %1047 = vmatpush1.bf16.msra.mxu0 0
        %1048 = vmatprep.subr.bf16.mxu0 0
        %1049 = vmatpush1.bf16.msra.mxu0 0
        %1050 = vmatprep.subr.bf16.mxu0 0
        %1051 = vmatpush1.bf16.msra.mxu0 %v1034
        %1052 = vmatprep.subr.bf16.mxu0 0
        %1053 = vmatpush2.bf16.msra.mxu0 0
        %1054 = vmatprep.subr.bf16.mxu0 0
        %1055 = vmatpush2.bf16.msra.mxu0 0
        %1056 = vmatprep.subr.bf16.mxu0 0
        %1057 = vmatpush2.bf16.msra.mxu0 0
        %1058 = vmatprep.subr.bf16.mxu0 0
        %1059 = vmatpush2.bf16.msra.mxu0 0
        %1060 = vmatprep.subr.bf16.mxu0 0
        %1061 = vmatpush2.bf16.msra.mxu0 0
        %1062 = vmatprep.subr.bf16.mxu0 0
        %1063 = vmatpush2.bf16.msra.mxu0 0
        %1064 = vmatprep.subr.bf16.mxu0 0
        %1065 = vmatpush2.bf16.msra.mxu0 0
        %1066 = vmatprep.subr.bf16.mxu0 0
        %1067 = vmatpush2.bf16.msra.mxu0 0
        %1068 = vmatprep.mubr.bf16.mxu0 0
        %1069 = vmatmul.mubr.bf16.gmra.mxu0 %v1031
        %v1070 = vpop.f32.mrf.mxu0
        %v1071 = vadd.f32 0.0, %v1070
        %v1072 = vpop.f32.mrf.mxu0
        %v1073 = vpop.f32.mrf.mxu0
        %v1074 = vpop.f32.mrf.mxu0
        %1075 = vdwg.mxu0
        %v1076 = vadd.f32 %v913, %v1071
        %1077 = vrot.lane.b32.xlu0 %v598, 104
        %v1078 = vpop.permute.xlu0 %1077
        %1079 = vrot.lane.b32.xlu0 %v599, 72
        %v1080 = vpop.permute.xlu0 %1079
        %v1082 = vsel %vm603, %v1078, 0
        %v1085 = vsel %vm603, %v1080, 0
        %1087 = vmatprep.subr.bf16.mxu0 0
        %1088 = vmatpush1.bf16.xpose.msra.mxu0 0
        %1089 = vmatprep.subr.bf16.mxu0 0
        %1090 = vmatpush1.bf16.xpose.msra.mxu0 0
        %1091 = vmatprep.subr.bf16.mxu0 0
        %1092 = vmatpush1.bf16.xpose.msra.mxu0 0
        %1093 = vmatprep.subr.bf16.mxu0 0
        %1094 = vmatpush1.bf16.xpose.msra.mxu0 0
        %1095 = vmatprep.subr.bf16.mxu0 0
        %1096 = vmatpush1.bf16.xpose.msra.mxu0 0
        %1097 = vmatprep.subr.bf16.mxu0 0
        %1098 = vmatpush1.bf16.xpose.msra.mxu0 0
        %1099 = vmatprep.subr.bf16.mxu0 0
        %1100 = vmatpush1.bf16.xpose.msra.mxu0 0
        %1101 = vmatprep.subr.bf16.mxu0 0
        %1102 = vmatpush1.bf16.xpose.msra.mxu0 %v1085
        %1103 = vmatprep.subr.bf16.mxu0 0
        %1104 = vmatpush2.bf16.xpose.msra.mxu0 0
        %1105 = vmatprep.subr.bf16.mxu0 0
        %1106 = vmatpush2.bf16.xpose.msra.mxu0 0
        %1107 = vmatprep.subr.bf16.mxu0 0
        %1108 = vmatpush2.bf16.xpose.msra.mxu0 0
        %1109 = vmatprep.subr.bf16.mxu0 0
        %1110 = vmatpush2.bf16.xpose.msra.mxu0 0
        %1111 = vmatprep.subr.bf16.mxu0 0
        %1112 = vmatpush2.bf16.xpose.msra.mxu0 0
        %1113 = vmatprep.subr.bf16.mxu0 0
        %1114 = vmatpush2.bf16.xpose.msra.mxu0 0
        %1115 = vmatprep.subr.bf16.mxu0 0
        %1116 = vmatpush2.bf16.xpose.msra.mxu0 0
        %1117 = vmatprep.subr.bf16.mxu0 0
        %1118 = vmatpush2.bf16.xpose.msra.mxu0 0
        %1119 = vmatprep.mubr.bf16.mxu0 0
        %1120 = vmatmul.mubr.bf16.gmra.mxu0 %v1082
        %v1121 = vpop.f32.mrf.mxu0
        %v1122 = vadd.f32 0.0, %v1121
        %v1123 = vpop.f32.mrf.mxu0
        %v1124 = vpop.f32.mrf.mxu0
        %v1125 = vpop.f32.mrf.mxu0
        %1126 = vdwg.mxu0
        %v1127 = vsel %vm603, %v1122, -inf
        %1128 = vmax.xlane.f32.xlu0 %v1127
        %v1129 = vpop.xlane.xlu0 %1128
        %v1130 = vsub.f32 %v1122, %v1129
        %v1131 = vmul.f32 %v1130, 1.442695
        %v1132 = vpow.pop %v1131
        %v1133 = vsel %vm603, %v1132, 0.0
        %1134 = vadd.xlane.f32.xlu0 %v1133
        %v1135 = vpop.xlane.xlu0 %1134
        %v1136 = vrcp.pop %v1135
        %v1137 = vmul.f32 %v1132, %v1136
        %v1138 = vpack.c.bf16 %v1137, %v1137
        %1139 = vrot.lane.b32.xlu0 %v599, 40
        %v1140 = vpop.permute.xlu0 %1139
        %v1142 = vsel %vm603, %v1138, 0
        %v1145 = vsel %vm667, %v1140, 0
        %1147 = vmatprep.subr.bf16.mxu0 0
        %1148 = vmatpush1.bf16.msra.mxu0 0
        %1149 = vmatprep.subr.bf16.mxu0 0
        %1150 = vmatpush1.bf16.msra.mxu0 0
        %1151 = vmatprep.subr.bf16.mxu0 0
        %1152 = vmatpush1.bf16.msra.mxu0 0
        %1153 = vmatprep.subr.bf16.mxu0 0
        %1154 = vmatpush1.bf16.msra.mxu0 0
        %1155 = vmatprep.subr.bf16.mxu0 0
        %1156 = vmatpush1.bf16.msra.mxu0 0
        %1157 = vmatprep.subr.bf16.mxu0 0
        %1158 = vmatpush1.bf16.msra.mxu0 0
        %1159 = vmatprep.subr.bf16.mxu0 0
        %1160 = vmatpush1.bf16.msra.mxu0 0
        %1161 = vmatprep.subr.bf16.mxu0 0
        %1162 = vmatpush1.bf16.msra.mxu0 %v1145
        %1163 = vmatprep.subr.bf16.mxu0 0
        %1164 = vmatpush2.bf16.msra.mxu0 0
        %1165 = vmatprep.subr.bf16.mxu0 0
        %1166 = vmatpush2.bf16.msra.mxu0 0
        %1167 = vmatprep.subr.bf16.mxu0 0
        %1168 = vmatpush2.bf16.msra.mxu0 0
        %1169 = vmatprep.subr.bf16.mxu0 0
        %1170 = vmatpush2.bf16.msra.mxu0 0
        %1171 = vmatprep.subr.bf16.mxu0 0
        %1172 = vmatpush2.bf16.msra.mxu0 0
        %1173 = vmatprep.subr.bf16.mxu0 0
        %1174 = vmatpush2.bf16.msra.mxu0 0
        %1175 = vmatprep.subr.bf16.mxu0 0
        %1176 = vmatpush2.bf16.msra.mxu0 0
        %1177 = vmatprep.subr.bf16.mxu0 0
        %1178 = vmatpush2.bf16.msra.mxu0 0
        %1179 = vmatprep.mubr.bf16.mxu0 0
        %1180 = vmatmul.mubr.bf16.gmra.mxu0 %v1142
        %v1181 = vpop.f32.mrf.mxu0
        %v1182 = vadd.f32 0.0, %v1181
        %v1183 = vpop.f32.mrf.mxu0
        %v1184 = vpop.f32.mrf.mxu0
        %v1185 = vpop.f32.mrf.mxu0
        %1186 = vdwg.mxu0
        %v1187 = vpack.c.bf16 %v1182, %v1182
        %v1188 = vpack.c.bf16 %v596, %v596
        %v1190 = vsel %vm603, %v1187, 0
        %v1193 = vsel %vm667, %v1188, 0
        %1195 = vmatprep.subr.bf16.mxu0 0
        %1196 = vmatpush1.bf16.msra.mxu0 0
        %1197 = vmatprep.subr.bf16.mxu0 0
        %1198 = vmatpush1.bf16.msra.mxu0 0
        %1199 = vmatprep.subr.bf16.mxu0 0
        %1200 = vmatpush1.bf16.msra.mxu0 0
        %1201 = vmatprep.subr.bf16.mxu0 0
        %1202 = vmatpush1.bf16.msra.mxu0 0
        %1203 = vmatprep.subr.bf16.mxu0 0
        %1204 = vmatpush1.bf16.msra.mxu0 0
        %1205 = vmatprep.subr.bf16.mxu0 0
        %1206 = vmatpush1.bf16.msra.mxu0 0
        %1207 = vmatprep.subr.bf16.mxu0 0
        %1208 = vmatpush1.bf16.msra.mxu0 0
        %1209 = vmatprep.subr.bf16.mxu0 0
        %1210 = vmatpush1.bf16.msra.mxu0 %v1193
        %1211 = vmatprep.subr.bf16.mxu0 0
        %1212 = vmatpush2.bf16.msra.mxu0 0
        %1213 = vmatprep.subr.bf16.mxu0 0
        %1214 = vmatpush2.bf16.msra.mxu0 0
        %1215 = vmatprep.subr.bf16.mxu0 0
        %1216 = vmatpush2.bf16.msra.mxu0 0
        %1217 = vmatprep.subr.bf16.mxu0 0
        %1218 = vmatpush2.bf16.msra.mxu0 0
        %1219 = vmatprep.subr.bf16.mxu0 0
        %1220 = vmatpush2.bf16.msra.mxu0 0
        %1221 = vmatprep.subr.bf16.mxu0 0
        %1222 = vmatpush2.bf16.msra.mxu0 0
        %1223 = vmatprep.subr.bf16.mxu0 0
        %1224 = vmatpush2.bf16.msra.mxu0 0
        %1225 = vmatprep.subr.bf16.mxu0 0
        %1226 = vmatpush2.bf16.msra.mxu0 0
        %1227 = vmatprep.mubr.bf16.mxu0 0
        %1228 = vmatmul.mubr.bf16.gmra.mxu0 %v1190
        %v1229 = vpop.f32.mrf.mxu0
        %v1230 = vadd.f32 0.0, %v1229
        %v1231 = vpop.f32.mrf.mxu0
        %v1232 = vpop.f32.mrf.mxu0
        %v1233 = vpop.f32.mrf.mxu0
        %1234 = vdwg.mxu0
        %v1235 = vadd.f32 %v1076, %v1230
        %v1236 = vadd.f32 %v490, %v1235
        %v1237 = vld [vmem:[%s6] sm:$0x1]
        %v1239 = vlaneseq
        %v1240 = vshrl.u32 %v1239, 7
        %v1241 = vsub.s32 0, %v1240
        %v1242 = vrot.slane %v1237, %v1241
        %v1244 = vadd.f32 %v1236, %v1242
        %v1245 = vld [vmem:[#allocation2] sm:$0x1]
        %v1246 = vld [vmem:[#allocation5] sm:$0x1]
        %v1247 = vsel %vm493, %v1244, 0.0
        %1248 = vadd.xlane.f32.xlu0 %v1247
        %v1249 = vpop.xlane.xlu0 %1248
        %v1250 = vmul.f32 %v1249, %v497
        %v1251 = vsub.f32 %v1244, %v1250
        %v1252 = vmul.f32 %v1251, %v1251
        %v1253 = vsel %vm493, %v1252, 0.0
        %1254 = vadd.xlane.f32.xlu0 %v1253
        %v1255 = vpop.xlane.xlu0 %1254
        %v1256 = vmul.f32 %v1255, %v497
        %v1257 = vadd.f32 %v1256, 1e-05
        %v1258 = vrsqrt.pop %v1257
        %v1259 = vmul.f32 %v1251, %v1258
        %v1261 = vlaneseq
        %v1262 = vshrl.u32 %v1261, 7
        %v1263 = vsub.s32 0, %v1262
        %v1264 = vrot.slane %v1245, %v1263
        %v1266 = vmul.f32 %v1259, %v1264
        %v1268 = vlaneseq
        %v1269 = vshrl.u32 %v1268, 7
        %v1270 = vsub.s32 0, %v1269
        %v1271 = vrot.slane %v1246, %v1270
        %v1273 = vadd.f32 %v1266, %v1271
        %v1274 = vpack.c.bf16 %v1273, %v1273
        %v1275 = vld [vmem:[#allocation7] sm:$0xf]
        %v1276 = vld [vmem:[#allocation7 + $0x4] sm:$0xf]
        %v1277 = vld [vmem:[#allocation7 + $0x8] sm:$0xf]
        %v1278 = vld [vmem:[#allocation7 + $0xc] sm:$0xf]
        %v1279 = vld [vmem:[#allocation8] sm:$0x1]
        %v1281 = vlaneseq
        %v1282 = vshrl.u32 %v1281, 7
        %v1283 = vsub.s32 0, %v1282
        %v1284 = vrot.slane %v1279, %v1283
        %v1290 = vunpack.c.l.b16 %v1275
        %v1291 = vunpack.c.l.b16 %v1276
        %v1292 = vunpack.c.l.b16 %v1277
        %v1293 = vunpack.c.l.b16 %v1278
        %v1294 = vpack.c.b16 %v1291, %v1290
        %v1295 = vpack.c.b16 %v1293, %v1292
        %v1299 = vsel %vm493, %v1274, 0
        %1301 = vmatprep.subr.bf16.mxu0 0
        %1302 = vmatpush1.bf16.msra.mxu0 0
        %1303 = vmatprep.subr.bf16.mxu0 0
        %1304 = vmatpush1.bf16.msra.mxu0 0
        %1305 = vmatprep.subr.bf16.mxu0 0
        %1306 = vmatpush1.bf16.msra.mxu0 0
        %1307 = vmatprep.subr.bf16.mxu0 0
        %1308 = vmatpush1.bf16.msra.mxu0 0
        %1309 = vmatprep.subr.bf16.mxu0 0
        %1310 = vmatpush1.bf16.msra.mxu0 0
        %1311 = vmatprep.subr.bf16.mxu0 0
        %1312 = vmatpush1.bf16.msra.mxu0 0
        %1313 = vmatprep.subr.bf16.mxu0 0
        %1314 = vmatpush1.bf16.msra.mxu0 %v1295
        %1315 = vmatprep.subr.bf16.mxu0 0
        %1316 = vmatpush1.bf16.msra.mxu0 %v1294
        %1317 = vmatprep.subr.bf16.mxu0 0
        %1318 = vmatpush2.bf16.msra.mxu0 0
        %1319 = vmatprep.subr.bf16.mxu0 0
        %1320 = vmatpush2.bf16.msra.mxu0 0
        %1321 = vmatprep.subr.bf16.mxu0 0
        %1322 = vmatpush2.bf16.msra.mxu0 0
        %1323 = vmatprep.subr.bf16.mxu0 0
        %1324 = vmatpush2.bf16.msra.mxu0 0
        %1325 = vmatprep.subr.bf16.mxu0 0
        %1326 = vmatpush2.bf16.msra.mxu0 0
        %1327 = vmatprep.subr.bf16.mxu0 0
        %1328 = vmatpush2.bf16.msra.mxu0 0
        %1329 = vmatprep.subr.bf16.mxu0 0
        %1330 = vmatpush2.bf16.msra.mxu0 0
        %1331 = vmatprep.subr.bf16.mxu0 0
        %1332 = vmatpush2.bf16.msra.mxu0 0
        %1333 = vmatprep.mubr.bf16.mxu0 0
        %1334 = vmatmul.mubr.bf16.gmra.mxu0 %v1299
        %v1335 = vpop.f32.mrf.mxu0
        %v1336 = vadd.f32 %v1284, %v1335
        %v1337 = vpop.f32.mrf.mxu0
        %v1338 = vpop.f32.mrf.mxu0
        %v1339 = vpop.f32.mrf.mxu0
        %1340 = vdwg.mxu0
        %v1341 = vmul.f32 %v1336, 0.5
        %v1342 = vmul.f32 %v1336, 0.044715
        %v1343 = vmul.f32 %v1342, %v1336
        %v1344 = vmul.f32 %v1343, %v1336
        %v1345 = vadd.f32 %v1336, %v1344
        %v1346 = vmul.f32 %v1345, 0.7978846
        %v1347 = vtanh.pop %v1346
        %v1348 = vadd.f32 %v1347, 1.0
        %v1349 = vmul.f32 %v1341, %v1348
        %v1350 = vpack.c.bf16 %v1349, %v1349
        %v1351 = vld [vmem:[%s11] sm:$0xf]
        %v1352 = vld [vmem:[%s11 + $0x4] sm:$0xf]
        %v1353 = vld [vmem:[%s11 + $0x8] sm:$0xf]
        %v1354 = vld [vmem:[%s11 + $0xc] sm:$0xf]
        %v1355 = vld [vmem:[%s11 + $0x10] sm:$0xf]
        %v1356 = vld [vmem:[%s11 + $0x14] sm:$0xf]
        %v1357 = vld [vmem:[%s11 + $0x18] sm:$0xf]
        %v1358 = vld [vmem:[%s11 + $0x1c] sm:$0xf]
        %v1359 = vld [vmem:[%s12] sm:$0x1]
        %v1361 = vlaneseq
        %v1362 = vshrl.u32 %v1361, 7
        %v1363 = vsub.s32 0, %v1362
        %v1364 = vrot.slane %v1359, %v1363
        %v1374 = vunpack.c.l.b16 %v1351
        %v1375 = vunpack.c.l.b16 %v1352
        %v1376 = vunpack.c.l.b16 %v1353
        %v1377 = vunpack.c.l.b16 %v1354
        %v1378 = vunpack.c.l.b16 %v1355
        %v1379 = vunpack.c.l.b16 %v1356
        %v1380 = vunpack.c.l.b16 %v1357
        %v1381 = vunpack.c.l.b16 %v1358
        %v1382 = vpack.c.b16 %v1375, %v1374
        %v1383 = vpack.c.b16 %v1377, %v1376
        %v1384 = vpack.c.b16 %v1379, %v1378
        %v1385 = vpack.c.b16 %v1381, %v1380
        %vm1390 = vcmask 523264
        %v1392 = vsel %vm1390, %v1350, 0
        %1394 = vmatprep.subr.bf16.mxu0 0
        %1395 = vmatpush1.bf16.msra.mxu0 0
        %1396 = vmatprep.subr.bf16.mxu0 0
        %1397 = vmatpush1.bf16.msra.mxu0 0
        %1398 = vmatprep.subr.bf16.mxu0 0
        %1399 = vmatpush1.bf16.msra.mxu0 0
        %1400 = vmatprep.subr.bf16.mxu0 0
        %1401 = vmatpush1.bf16.msra.mxu0 0
        %1402 = vmatprep.subr.bf16.mxu0 0
        %1403 = vmatpush1.bf16.msra.mxu0 %v1385
        %1404 = vmatprep.subr.bf16.mxu0 0
        %1405 = vmatpush1.bf16.msra.mxu0 %v1384
        %1406 = vmatprep.subr.bf16.mxu0 0
        %1407 = vmatpush1.bf16.msra.mxu0 %v1383
        %1408 = vmatprep.subr.bf16.mxu0 0
        %1409 = vmatpush1.bf16.msra.mxu0 %v1382
        %1410 = vmatprep.subr.bf16.mxu0 0
        %1411 = vmatpush2.bf16.msra.mxu0 0
        %1412 = vmatprep.subr.bf16.mxu0 0
        %1413 = vmatpush2.bf16.msra.mxu0 0
        %1414 = vmatprep.subr.bf16.mxu0 0
        %1415 = vmatpush2.bf16.msra.mxu0 0
        %1416 = vmatprep.subr.bf16.mxu0 0
        %1417 = vmatpush2.bf16.msra.mxu0 0
        %1418 = vmatprep.subr.bf16.mxu0 0
        %1419 = vmatpush2.bf16.msra.mxu0 0
        %1420 = vmatprep.subr.bf16.mxu0 0
        %1421 = vmatpush2.bf16.msra.mxu0 0
        %1422 = vmatprep.subr.bf16.mxu0 0
        %1423 = vmatpush2.bf16.msra.mxu0 0
        %1424 = vmatprep.subr.bf16.mxu0 0
        %1425 = vmatpush2.bf16.msra.mxu0 0
        %1426 = vmatprep.mubr.bf16.mxu0 0
        %1427 = vmatmul.mubr.bf16.gmra.mxu0 %v1392
        %v1428 = vpop.f32.mrf.mxu0
        %v1429 = vadd.f32 %v1364, %v1428
        %v1430 = vpop.f32.mrf.mxu0
        %v1431 = vpop.f32.mrf.mxu0
        %v1432 = vpop.f32.mrf.mxu0
        %1433 = vdwg.mxu0
        %v1434 = vadd.f32 %v1244, %v1429
        %1435 = vst.msk [vmem:[%s484] sm:$0xff] %vm493, %v1434
        %s1436 = sand.u32 %s316, 1
        %s1437 = scalar_lea.sflag [#allocation4], %s1436
        %s1438 = sand.u32 %s316, 1
        %s1439 = smul.addr %s1438, 8
        %s1440 = scalar_lea.vmem [#allocation10], %s1439
        // Predicated region
        $region89: #{tpu_custom_call.1} parent=71 // pred_check
          %p1441 = pneg %p326
        $region90: #{tpu_custom_call.1} parent=71 // pred_check_branch
          %1443 = sbr.rel (%p1441) target = $region92
        $region91: #{tpu_custom_call.1} parent=71 // pred_region
          %s1445 = ssub.s32 128, 128
          %1446 = vsyncadd %s1437, %s1445
          %s1447 = smul.addr %s30, 128
          %s1448 = scalar_lea.hbm %s13, %s1447
          %s1450 = sshll.u32 %s1440, 4
          %s1451 = int_to_ptr.vmem [resolvable:$true] %s1450
          %1453 = dma.vmem_to_hbm [thread:$0]  %s1451, 128, %s1448, %s1437
        $region92: #{tpu_custom_call.1} parent=71 // pred_fallthru
          _
      $region72: #{tpu_custom_call.1} parent=5 // pred_fallthru
        _
      %p1454 = scmp.le.s32.totalorder 2, %s25
      // Predicated region
      $region93: #{tpu_custom_call.1} parent=5 // pred_check
        %p1455 = pneg %p1454
      $region94: #{tpu_custom_call.1} parent=5 // pred_check_branch
        %1457 = sbr.rel (%p1455) target = $region96
      $region95: #{tpu_custom_call.1} parent=5 // pred_region
        %s1458 = ssub.s32 %s25, 2
        // Predicated region
        $region97: #{tpu_custom_call.1} parent=95 // pred_check
          %p1459 = pneg %p332
        $region98: #{tpu_custom_call.1} parent=95 // pred_check_branch
          %1461 = sbr.rel (%p1459) target = $region100
        $region99: #{tpu_custom_call.1} parent=95 // pred_region
          %s1462 = sand.u32 %s317, 1
          %s1463 = scalar_lea.sflag [#allocation4], %s1462
          %s1464 = sand.u32 %s317, 1
          %s1465 = smul.addr %s1464, 8
          %s1466 = scalar_lea.vmem [#allocation10], %s1465
          %1467 = dma.done %s1463, 128
        $region100: #{tpu_custom_call.1} parent=95 // pred_fallthru
          _
      $region96: #{tpu_custom_call.1} parent=5 // pred_fallthru
        _
    $region6: #{tpu_custom_call.1} parent=1 // loop_footer
      %s29 = sadd.s32 1, %s25
    $region7: #{tpu_custom_call.1} parent=1 // loop_footer_branch
      %24 = sbr.rel target = $region3
    $region8: #{tpu_custom_call.1} parent=1 // loop_exit
      _
    %1468 = vsyncpa [#allocation3], 1
    %s1469 = scalar_lea.sflag [#allocation3], 1
    %1470 = vsyncpa %s1469, 1
    %1471 = vsyncpa [#allocation6], 1
    %1472 = vsyncpa [#allocation9], 1
    %1473 = vsyncpa [#allocation4], 1
    %s1474 = scalar_lea.sflag [#allocation4], 1
    %1475 = vsyncpa %s1474, 1

</llo_original>
